<compile_context>
chip_gen: v7x
topology: tpu7x:2x2x1
jax: 0.10.0
libtpu: 0.0.40
codegen_flags: <defaults>
</compile_context>

<pallas_src>
import functools

import numpy as np

import jax
import jax.numpy as jnp
from jax.experimental import pallas as pl
from jax.experimental.pallas import tpu as pltpu

_EPS = 1e-5     # torch.nn.BatchNorm2d default
_SLOPE = 0.2    # LeakyReLU negative slope


# -----------------------------------------------------------------------------
# Fused encoder kernel: conv1 + BN1 + LReLU + (in-VMEM im2col) + conv2 + BN2 +
# LReLU + NCHW-flatten-ordered output, all in one pallas_call.
# -----------------------------------------------------------------------------
def _bn_lrelu(y, gamma, beta, eps, slope):
    """Training-mode BatchNorm (single pass, biased var) + LeakyReLU.

    `y` is [C, M] with channels along rows; stats are taken over the lane (M)
    axis and the affine is folded into a single scale/shift FMA.
    """
    mean = jnp.mean(y, axis=1, keepdims=True)            # [C, 1]
    mean_sq = jnp.mean(y * y, axis=1, keepdims=True)     # [C, 1]
    var = mean_sq - mean * mean                          # biased, matches torch
    scale = gamma * jax.lax.rsqrt(var + eps)             # [C, 1]
    shift = beta - mean * scale
    z = y * scale + shift
    return jnp.where(z >= 0, z, slope * z)


def _fused_encoder_kernel(p1t_ref, w1t_ref, w2t_ref, gt_ref, bn_ref, out_ref,
                          *, c1, c2, n_taps, batch, hw2, eps, slope):
    f32 = jnp.float32

    # ----- ConvBlock 1: transposed matmul -> lane-dense [C1, N*H1*W1] -------
    # Conv bias omitted on purpose: it cancels in training-mode BN.
    y1 = jnp.dot(w1t_ref[...], p1t_ref[...], preferred_element_type=f32)
    h1 = _bn_lrelu(y1, bn_ref[0:c1, 0:1], bn_ref[0:c1, 1:2], eps, slope)

    # ----- In-VMEM im2col for layer 2: one 0/1 gather-matmul per tap --------
    # gt_ref[t] is a constant [N*H1*W1, N*H2*W2] selection matrix (zero rows
    # encode the conv zero-padding).  Stacking the k*k tap blocks along the
    # sublane axis builds P2^T = [k*k*C1, N*H2*W2] without touching HBM.
    blocks = [jnp.dot(h1, gt_ref[t], preferred_element_type=f32)
              for t in range(n_taps)]                    # each [C1, M2]
    p2t = jnp.concatenate(blocks, axis=0)                # [k*k*C1, M2]

    # ----- ConvBlock 2: single K = k*k*C1 matmul -----------------------------
    y2 = jnp.dot(w2t_ref[...], p2t, preferred_element_type=f32)   # [C2, M2]
    h2 = _bn_lrelu(y2, bn_ref[c1:c1 + c2, 0:1], bn_ref[c1:c1 + c2, 1:2],
                   eps, slope)

    # ----- Write output already in NCHW-flatten order ------------------------
    # h2 columns are ordered (n, h2, w2), so the per-batch [C2, H2*W2] block
    # is exactly PyTorch's x.view(batch, -1) layout for an NCHW tensor.
    for n in range(batch):
        out_ref[n, :, :] = h2[:, n * hw2:(n + 1) * hw2]


def fused_encoder(p1t, w1t, w2t, gt, bn, *, batch, hw2, eps=_EPS, slope=_SLOPE):
    """p1t: [K1, M1] transposed layer-1 patches, w1t: [C1, K1], w2t: [C2, K2],
    gt: [k*k, M1, M2] constant 0/1 tap gathers, bn: [C1+C2, 2] (gamma, beta).
    Returns [batch, C2, H2*W2] (already in NCHW-flatten order)."""
    c1 = w1t.shape[0]
    c2 = w2t.shape[0]
    n_taps = gt.shape[0]
    kernel = functools.partial(
        _fused_encoder_kernel, c1=c1, c2=c2, n_taps=n_taps, batch=batch,
        hw2=hw2, eps=eps, slope=slope)
    return pl.pallas_call(
        kernel,
        out_shape=jax.ShapeDtypeStruct((batch, c2, hw2), jnp.float32),
        grid=(1,),  # whole problem (< 1 MiB) is VMEM-resident; tile the
                    # M (= N*H*W) axis into a grid dim for production sizes.
        in_specs=[
            pl.BlockSpec(p1t.shape, lambda i: (0, 0)),
            pl.BlockSpec(w1t.shape, lambda i: (0, 0)),
            pl.BlockSpec(w2t.shape, lambda i: (0, 0)),
            pl.BlockSpec(gt.shape, lambda i: (0, 0, 0)),
            pl.BlockSpec(bn.shape, lambda i: (0, 0)),
        ],
        out_specs=pl.BlockSpec((batch, c2, hw2), lambda i: (0, 0, 0)),
        compiler_params=pltpu.CompilerParams(
            dimension_semantics=("arbitrary",),
            vmem_limit_bytes=32 * 1024 * 1024),
    )(p1t, w1t, w2t, gt, bn)


# -----------------------------------------------------------------------------
# Wrapper-side plumbing (pure layout work on tiny, constant-size data)
# -----------------------------------------------------------------------------
def _conv_out(size, k, s, p):
    return (size + 2 * p - k) // s + 1


def _im2col_T(x_nhwc, k, s, p):
    """Transposed im2col of the RAW input: [k*k*C_in, N*Ho*Wo].
    Rows ordered (di, dj, c_in); columns ordered (n, ho, wo)."""
    n, h, w, c = x_nhwc.shape
    ho = _conv_out(h, k, s, p)
    wo = _conv_out(w, k, s, p)
    xp = jnp.pad(x_nhwc, ((0, 0), (p, p), (p, p), (0, 0)))
    taps = []
    for di in range(k):
        for dj in range(k):
            taps.append(xp[:, di:di + s * ho:s, dj:dj + s * wo:s, :])
    patches = jnp.concatenate(taps, axis=-1)             # [N, Ho, Wo, k*k*C]
    return patches.reshape(n * ho * wo, k * k * c).T     # [K1, M1]


def _build_tap_gathers(batch, h_in, w_in, h_out, w_out, k, s, p):
    """Constant 0/1 gather matrices implementing the layer-2 im2col as
    matmuls: gt[t][r, m] = 1 iff layer-1 position r = (n, hi, wi) feeds tap
    t = (di, dj) of layer-2 output m = (n, ho, wo); padding -> all-zero."""
    g = np.zeros((k * k, batch * h_in * w_in, batch * h_out * w_out),
                 np.float32)
    for di in range(k):
        for dj in range(k):
            t = di * k + dj
            for n in range(batch):
                for ho in range(h_out):
                    for wo in range(w_out):
                        hi = s * ho + di - p
                        wi = s * wo + dj - p
                        if 0 <= hi < h_in and 0 <= wi < w_in:
                            r = (n * h_in + hi) * w_in + wi
                            m = (n * h_out + ho) * w_out + wo
                            g[t, r, m] = 1.0
    return jnp.asarray(g)


def make_params(key, enc_cfg):
    """Parameters matching the PyTorch module after weights_init:
    conv weight ~ N(0, 0.02) (stored HWIO), BN gamma ~ N(0, 0.02), BN beta = 0.
    The conv bias is omitted: it cancels exactly under training-mode BN."""
    params = []
    for (c_in, c_out, k, s, p) in enc_cfg:
        key, kw, kg = jax.random.split(key, 3)
        params.append(dict(
            w=0.02 * jax.random.normal(kw, (k, k, c_in, c_out), jnp.float32),
            gamma=0.02 * jax.random.normal(kg, (c_out,), jnp.float32),
            beta=jnp.zeros((c_out,), jnp.float32)))
    return params


def denoiser_special2_forward(xadv1_nchw, xadv2_nchw, params, enc_cfg):
    """Reproduces Denoiser_special2.forward: encode(xadv2), flatten if xadv1
    has > 2 dims.  (insert_attrs / return_enc are unused, as in torch.)"""
    assert len(enc_cfg) == 2, "fused kernel is specialized to the 2-conv encoder"
    batch = xadv2_nchw.shape[0]
    (_, c1, k1, s1, pad1), (_, c2, k2, s2, pad2) = enc_cfg
    l1, l2 = params

    x_nhwc = jnp.transpose(xadv2_nchw, (0, 2, 3, 1)).astype(jnp.float32)
    h_in, w_in = x_nhwc.shape[1], x_nhwc.shape[2]
    h1o, w1o = _conv_out(h_in, k1, s1, pad1), _conv_out(w_in, k1, s1, pad1)
    h2o, w2o = _conv_out(h1o, k2, s2, pad2), _conv_out(w1o, k2, s2, pad2)

    # Layer-1 im2col (transposed) built by XLA from the raw input, read once.
    p1t = _im2col_T(x_nhwc, k1, s1, pad1)                 # [k1*k1*Cin, N*H1*W1]

    w1t = l1["w"].reshape(-1, c1).T                       # [C1, k1*k1*Cin]
    w2t = l2["w"].reshape(-1, c2).T                       # [C2, k2*k2*C1]
    gt = _build_tap_gathers(batch, h1o, w1o, h2o, w2o, k2, s2, pad2)
    bn = jnp.concatenate(
        [jnp.stack([l1["gamma"], l1["beta"]], axis=-1),
         jnp.stack([l2["gamma"], l2["beta"]], axis=-1)], axis=0)   # [C1+C2, 2]

    out = fused_encoder(p1t, w1t, w2t, gt, bn, batch=batch, hw2=h2o * w2o)

    # out is [N, C2, H2*W2], already in PyTorch's NCHW view(batch, -1) order.
    if xadv1_nchw.ndim > 2:
        return out.reshape(batch, -1)                     # free bitcast
    return out.reshape(batch, c2, h2o, w2o)
    # TODO(synk): self.fc1 / self.dropout exist in __init__ but are unused in
    # forward(), so they are intentionally not implemented here.


# -----------------------------------------------------------------------------
# Pure-JAX reference (conv -> training-mode BN -> LeakyReLU, NCHW flatten)
# -----------------------------------------------------------------------------
def _reference_forward(xadv1, xadv2, params, enc_cfg):
    x = jnp.transpose(xadv2, (0, 2, 3, 1)).astype(jnp.float32)
    for layer, (_, _, k, s, p) in zip(params, enc_cfg):
        y = jax.lax.conv_general_dilated(
            x, layer["w"], window_strides=(s, s), padding=[(p, p), (p, p)],
            dimension_numbers=("NHWC", "HWIO", "NHWC"),
            precision=jax.lax.Precision.HIGHEST)
        mean = jnp.mean(y, axis=(0, 1, 2), keepdims=True)
        var = jnp.mean(jnp.square(y - mean), axis=(0, 1, 2), keepdims=True)
        z = (y - mean) * jax.lax.rsqrt(var + _EPS) * layer["gamma"] + layer["beta"]
        x = jnp.where(z >= 0, z, _SLOPE * z)
    x = jnp.transpose(x, (0, 3, 1, 2))
    return x.reshape(x.shape[0], -1) if xadv1.ndim > 2 else x


if __name__ == "__main__":
    # Small shapes consistent with the module: batch=2, channels=4, spatial=16.
    key = jax.random.PRNGKey(0)
    k_x1, k_x2, k_p = jax.random.split(key, 3)

    xadv1 = jax.random.normal(k_x1, (2, 4, 16, 16), jnp.float32)  # NCHW
    xadv2 = jax.random.normal(k_x2, (2, 4, 16, 16), jnp.float32)  # NCHW

    # enc_list: two conv blocks (c_in, c_out, k, s, p)
    enc_cfg = ((4, 8, 4, 2, 1),
               (8, 16, 4, 2, 1))
    params = make_params(k_p, enc_cfg)

    fwd = jax.jit(functools.partial(denoiser_special2_forward, enc_cfg=enc_cfg))
    out = jax.block_until_ready(fwd(xadv1, xadv2, params))

    assert out.shape == (2, 16 * 4 * 4), out.shape
    assert bool(jnp.all(jnp.isfinite(out)))

    ref = _reference_forward(xadv1, xadv2, params, enc_cfg)
    assert jnp.allclose(out, ref, rtol=1e-3, atol=1e-4), \
        float(jnp.max(jnp.abs(out - ref)))

    print("KERNEL_OK")
</pallas_src>

<mosaic_0001>
module attributes {stable_mosaic.version = 11 : i64} {
  func.func @_fused_encoder_kernel(%arg0: i32, %arg1: memref<64x128xf32, #tpu.memory_space<vmem>>, %arg2: memref<8x64xf32, #tpu.memory_space<vmem>>, %arg3: memref<16x128xf32, #tpu.memory_space<vmem>>, %arg4: memref<16x128x32xf32, #tpu.memory_space<vmem>>, %arg5: memref<24x2xf32, #tpu.memory_space<vmem>>, %arg6: memref<2x16x16xf32, #tpu.memory_space<vmem>>) attributes {dimension_semantics = [#tpu.dimension_semantics<arbitrary>], iteration_bounds = array<i64: 1>, scalar_prefetch = 0 : i64, scratch_operands = 0 : i64, tpu.core_type = #tpu.core_type<tc>, window_params = [{pipeline_mode = #tpu.pipeline_mode<synchronous>, transform_indices = @transform_0, window_bounds = array<i64: 64, 128>}, {pipeline_mode = #tpu.pipeline_mode<synchronous>, transform_indices = @transform_1, window_bounds = array<i64: 8, 64>}, {pipeline_mode = #tpu.pipeline_mode<synchronous>, transform_indices = @transform_2, window_bounds = array<i64: 16, 128>}, {pipeline_mode = #tpu.pipeline_mode<synchronous>, transform_indices = @transform_3, window_bounds = array<i64: 16, 128, 32>}, {pipeline_mode = #tpu.pipeline_mode<synchronous>, transform_indices = @transform_4, window_bounds = array<i64: 24, 2>}, {pipeline_mode = #tpu.pipeline_mode<synchronous>, transform_indices = @transform_5, window_bounds = array<i64: 2, 16, 16>}]} {
    %c0 = arith.constant 0 : index
    %c0_0 = arith.constant 0 : index
    %0 = vector.load %arg2[%c0, %c0_0] : memref<8x64xf32, #tpu.memory_space<vmem>>, vector<8x64xf32>
    %c0_1 = arith.constant 0 : index
    %c0_2 = arith.constant 0 : index
    %1 = vector.load %arg1[%c0_1, %c0_2] : memref<64x128xf32, #tpu.memory_space<vmem>>, vector<64x128xf32>
    %cst = arith.constant dense<0.000000e+00> : vector<8x128xf32>
    %2 = tpu.matmul %0, %1, %cst {dimension_numbers = #tpu.dot_dimension_numbers<[1], [0], [0], [1], [0, 0, 1, 1], [], []>} : vector<8x64xf32>, vector<64x128xf32>, vector<8x128xf32> -> vector<8x128xf32>
    %c0_3 = arith.constant 0 : index
    %c0_4 = arith.constant 0 : index
    %3 = vector.load %arg5[%c0_3, %c0_4] : memref<24x2xf32, #tpu.memory_space<vmem>>, vector<8x1xf32>
    %c0_5 = arith.constant 0 : index
    %c1 = arith.constant 1 : index
    %4 = vector.load %arg5[%c0_5, %c1] : memref<24x2xf32, #tpu.memory_space<vmem>>, vector<8x1xf32>
    %cst_6 = arith.constant dense<0.000000e+00> : vector<8xf32>
    %5 = vector.multi_reduction <add>, %2, %cst_6 [1] : vector<8x128xf32> to vector<8xf32>
    %6 = vector.shape_cast %5 : vector<8xf32> to vector<8x1xf32>
    %cst_7 = arith.constant 1.280000e+02 : f32
    %7 = vector.broadcast %cst_7 : f32 to vector<8x1xf32>
    %8 = arith.divf %6, %7 : vector<8x1xf32>
    %9 = arith.mulf %2, %2 : vector<8x128xf32>
    %cst_8 = arith.constant dense<0.000000e+00> : vector<8xf32>
    %10 = vector.multi_reduction <add>, %9, %cst_8 [1] : vector<8x128xf32> to vector<8xf32>
    %11 = vector.shape_cast %10 : vector<8xf32> to vector<8x1xf32>
    %cst_9 = arith.constant 1.280000e+02 : f32
    %12 = vector.broadcast %cst_9 : f32 to vector<8x1xf32>
    %13 = arith.divf %11, %12 : vector<8x1xf32>
    %14 = arith.mulf %8, %8 : vector<8x1xf32>
    %15 = arith.subf %13, %14 : vector<8x1xf32>
    %cst_10 = arith.constant 9.99999974E-6 : f32
    %16 = vector.broadcast %cst_10 : f32 to vector<8x1xf32>
    %17 = arith.addf %15, %16 : vector<8x1xf32>
    %18 = math.rsqrt %17 : vector<8x1xf32>
    %19 = arith.mulf %3, %18 : vector<8x1xf32>
    %20 = arith.mulf %8, %19 : vector<8x1xf32>
    %21 = arith.subf %4, %20 : vector<8x1xf32>
    %22 = vector.broadcast %19 : vector<8x1xf32> to vector<8x128xf32>
    %23 = arith.mulf %2, %22 : vector<8x128xf32>
    %24 = vector.broadcast %21 : vector<8x1xf32> to vector<8x128xf32>
    %25 = arith.addf %23, %24 : vector<8x128xf32>
    %cst_11 = arith.constant 0.000000e+00 : f32
    %26 = vector.broadcast %cst_11 : f32 to vector<8x128xf32>
    %27 = arith.cmpf oge, %25, %26 : vector<8x128xf32>
    %cst_12 = arith.constant 2.000000e-01 : f32
    %28 = vector.broadcast %cst_12 : f32 to vector<8x128xf32>
    %29 = arith.mulf %28, %25 : vector<8x128xf32>
    %30 = arith.select %27, %25, %29 : vector<8x128xi1>, vector<8x128xf32>
    %c0_13 = arith.constant 0 : index
    %c0_14 = arith.constant 0 : index
    %c0_15 = arith.constant 0 : index
    %31 = vector.load %arg4[%c0_13, %c0_14, %c0_15] : memref<16x128x32xf32, #tpu.memory_space<vmem>>, vector<1x128x32xf32>
    %32 = vector.shape_cast %31 : vector<1x128x32xf32> to vector<128x32xf32>
    %cst_16 = arith.constant dense<0.000000e+00> : vector<8x32xf32>
    %33 = tpu.matmul %30, %32, %cst_16 {dimension_numbers = #tpu.dot_dimension_numbers<[1], [0], [0], [1], [0, 0, 1, 1], [], []>} : vector<8x128xf32>, vector<128x32xf32>, vector<8x32xf32> -> vector<8x32xf32>
    %c1_17 = arith.constant 1 : index
    %c0_18 = arith.constant 0 : index
    %c0_19 = arith.constant 0 : index
    %34 = vector.load %arg4[%c1_17, %c0_18, %c0_19] : memref<16x128x32xf32, #tpu.memory_space<vmem>>, vector<1x128x32xf32>
    %35 = vector.shape_cast %34 : vector<1x128x32xf32> to vector<128x32xf32>
    %cst_20 = arith.constant dense<0.000000e+00> : vector<8x32xf32>
    %36 = tpu.matmul %30, %35, %cst_20 {dimension_numbers = #tpu.dot_dimension_numbers<[1], [0], [0], [1], [0, 0, 1, 1], [], []>} : vector<8x128xf32>, vector<128x32xf32>, vector<8x32xf32> -> vector<8x32xf32>
    %c2 = arith.constant 2 : index
    %c0_21 = arith.constant 0 : index
    %c0_22 = arith.constant 0 : index
    %37 = vector.load %arg4[%c2, %c0_21, %c0_22] : memref<16x128x32xf32, #tpu.memory_space<vmem>>, vector<1x128x32xf32>
    %38 = vector.shape_cast %37 : vector<1x128x32xf32> to vector<128x32xf32>
    %cst_23 = arith.constant dense<0.000000e+00> : vector<8x32xf32>
    %39 = tpu.matmul %30, %38, %cst_23 {dimension_numbers = #tpu.dot_dimension_numbers<[1], [0], [0], [1], [0, 0, 1, 1], [], []>} : vector<8x128xf32>, vector<128x32xf32>, vector<8x32xf32> -> vector<8x32xf32>
    %c3 = arith.constant 3 : index
    %c0_24 = arith.constant 0 : index
    %c0_25 = arith.constant 0 : index
    %40 = vector.load %arg4[%c3, %c0_24, %c0_25] : memref<16x128x32xf32, #tpu.memory_space<vmem>>, vector<1x128x32xf32>
    %41 = vector.shape_cast %40 : vector<1x128x32xf32> to vector<128x32xf32>
    %cst_26 = arith.constant dense<0.000000e+00> : vector<8x32xf32>
    %42 = tpu.matmul %30, %41, %cst_26 {dimension_numbers = #tpu.dot_dimension_numbers<[1], [0], [0], [1], [0, 0, 1, 1], [], []>} : vector<8x128xf32>, vector<128x32xf32>, vector<8x32xf32> -> vector<8x32xf32>
    %c4 = arith.constant 4 : index
    %c0_27 = arith.constant 0 : index
    %c0_28 = arith.constant 0 : index
    %43 = vector.load %arg4[%c4, %c0_27, %c0_28] : memref<16x128x32xf32, #tpu.memory_space<vmem>>, vector<1x128x32xf32>
    %44 = vector.shape_cast %43 : vector<1x128x32xf32> to vector<128x32xf32>
    %cst_29 = arith.constant dense<0.000000e+00> : vector<8x32xf32>
    %45 = tpu.matmul %30, %44, %cst_29 {dimension_numbers = #tpu.dot_dimension_numbers<[1], [0], [0], [1], [0, 0, 1, 1], [], []>} : vector<8x128xf32>, vector<128x32xf32>, vector<8x32xf32> -> vector<8x32xf32>
    %c5 = arith.constant 5 : index
    %c0_30 = arith.constant 0 : index
    %c0_31 = arith.constant 0 : index
    %46 = vector.load %arg4[%c5, %c0_30, %c0_31] : memref<16x128x32xf32, #tpu.memory_space<vmem>>, vector<1x128x32xf32>
    %47 = vector.shape_cast %46 : vector<1x128x32xf32> to vector<128x32xf32>
    %cst_32 = arith.constant dense<0.000000e+00> : vector<8x32xf32>
    %48 = tpu.matmul %30, %47, %cst_32 {dimension_numbers = #tpu.dot_dimension_numbers<[1], [0], [0], [1], [0, 0, 1, 1], [], []>} : vector<8x128xf32>, vector<128x32xf32>, vector<8x32xf32> -> vector<8x32xf32>
    %c6 = arith.constant 6 : index
    %c0_33 = arith.constant 0 : index
    %c0_34 = arith.constant 0 : index
    %49 = vector.load %arg4[%c6, %c0_33, %c0_34] : memref<16x128x32xf32, #tpu.memory_space<vmem>>, vector<1x128x32xf32>
    %50 = vector.shape_cast %49 : vector<1x128x32xf32> to vector<128x32xf32>
    %cst_35 = arith.constant dense<0.000000e+00> : vector<8x32xf32>
    %51 = tpu.matmul %30, %50, %cst_35 {dimension_numbers = #tpu.dot_dimension_numbers<[1], [0], [0], [1], [0, 0, 1, 1], [], []>} : vector<8x128xf32>, vector<128x32xf32>, vector<8x32xf32> -> vector<8x32xf32>
    %c7 = arith.constant 7 : index
    %c0_36 = arith.constant 0 : index
    %c0_37 = arith.constant 0 : index
    %52 = vector.load %arg4[%c7, %c0_36, %c0_37] : memref<16x128x32xf32, #tpu.memory_space<vmem>>, vector<1x128x32xf32>
    %53 = vector.shape_cast %52 : vector<1x128x32xf32> to vector<128x32xf32>
    %cst_38 = arith.constant dense<0.000000e+00> : vector<8x32xf32>
    %54 = tpu.matmul %30, %53, %cst_38 {dimension_numbers = #tpu.dot_dimension_numbers<[1], [0], [0], [1], [0, 0, 1, 1], [], []>} : vector<8x128xf32>, vector<128x32xf32>, vector<8x32xf32> -> vector<8x32xf32>
    %c8 = arith.constant 8 : index
    %c0_39 = arith.constant 0 : index
    %c0_40 = arith.constant 0 : index
    %55 = vector.load %arg4[%c8, %c0_39, %c0_40] : memref<16x128x32xf32, #tpu.memory_space<vmem>>, vector<1x128x32xf32>
    %56 = vector.shape_cast %55 : vector<1x128x32xf32> to vector<128x32xf32>
    %cst_41 = arith.constant dense<0.000000e+00> : vector<8x32xf32>
    %57 = tpu.matmul %30, %56, %cst_41 {dimension_numbers = #tpu.dot_dimension_numbers<[1], [0], [0], [1], [0, 0, 1, 1], [], []>} : vector<8x128xf32>, vector<128x32xf32>, vector<8x32xf32> -> vector<8x32xf32>
    %c9 = arith.constant 9 : index
    %c0_42 = arith.constant 0 : index
    %c0_43 = arith.constant 0 : index
    %58 = vector.load %arg4[%c9, %c0_42, %c0_43] : memref<16x128x32xf32, #tpu.memory_space<vmem>>, vector<1x128x32xf32>
    %59 = vector.shape_cast %58 : vector<1x128x32xf32> to vector<128x32xf32>
    %cst_44 = arith.constant dense<0.000000e+00> : vector<8x32xf32>
    %60 = tpu.matmul %30, %59, %cst_44 {dimension_numbers = #tpu.dot_dimension_numbers<[1], [0], [0], [1], [0, 0, 1, 1], [], []>} : vector<8x128xf32>, vector<128x32xf32>, vector<8x32xf32> -> vector<8x32xf32>
    %c10 = arith.constant 10 : index
    %c0_45 = arith.constant 0 : index
    %c0_46 = arith.constant 0 : index
    %61 = vector.load %arg4[%c10, %c0_45, %c0_46] : memref<16x128x32xf32, #tpu.memory_space<vmem>>, vector<1x128x32xf32>
    %62 = vector.shape_cast %61 : vector<1x128x32xf32> to vector<128x32xf32>
    %cst_47 = arith.constant dense<0.000000e+00> : vector<8x32xf32>
    %63 = tpu.matmul %30, %62, %cst_47 {dimension_numbers = #tpu.dot_dimension_numbers<[1], [0], [0], [1], [0, 0, 1, 1], [], []>} : vector<8x128xf32>, vector<128x32xf32>, vector<8x32xf32> -> vector<8x32xf32>
    %c11 = arith.constant 11 : index
    %c0_48 = arith.constant 0 : index
    %c0_49 = arith.constant 0 : index
    %64 = vector.load %arg4[%c11, %c0_48, %c0_49] : memref<16x128x32xf32, #tpu.memory_space<vmem>>, vector<1x128x32xf32>
    %65 = vector.shape_cast %64 : vector<1x128x32xf32> to vector<128x32xf32>
    %cst_50 = arith.constant dense<0.000000e+00> : vector<8x32xf32>
    %66 = tpu.matmul %30, %65, %cst_50 {dimension_numbers = #tpu.dot_dimension_numbers<[1], [0], [0], [1], [0, 0, 1, 1], [], []>} : vector<8x128xf32>, vector<128x32xf32>, vector<8x32xf32> -> vector<8x32xf32>
    %c12 = arith.constant 12 : index
    %c0_51 = arith.constant 0 : index
    %c0_52 = arith.constant 0 : index
    %67 = vector.load %arg4[%c12, %c0_51, %c0_52] : memref<16x128x32xf32, #tpu.memory_space<vmem>>, vector<1x128x32xf32>
    %68 = vector.shape_cast %67 : vector<1x128x32xf32> to vector<128x32xf32>
    %cst_53 = arith.constant dense<0.000000e+00> : vector<8x32xf32>
    %69 = tpu.matmul %30, %68, %cst_53 {dimension_numbers = #tpu.dot_dimension_numbers<[1], [0], [0], [1], [0, 0, 1, 1], [], []>} : vector<8x128xf32>, vector<128x32xf32>, vector<8x32xf32> -> vector<8x32xf32>
    %c13 = arith.constant 13 : index
    %c0_54 = arith.constant 0 : index
    %c0_55 = arith.constant 0 : index
    %70 = vector.load %arg4[%c13, %c0_54, %c0_55] : memref<16x128x32xf32, #tpu.memory_space<vmem>>, vector<1x128x32xf32>
    %71 = vector.shape_cast %70 : vector<1x128x32xf32> to vector<128x32xf32>
    %cst_56 = arith.constant dense<0.000000e+00> : vector<8x32xf32>
    %72 = tpu.matmul %30, %71, %cst_56 {dimension_numbers = #tpu.dot_dimension_numbers<[1], [0], [0], [1], [0, 0, 1, 1], [], []>} : vector<8x128xf32>, vector<128x32xf32>, vector<8x32xf32> -> vector<8x32xf32>
    %c14 = arith.constant 14 : index
    %c0_57 = arith.constant 0 : index
    %c0_58 = arith.constant 0 : index
    %73 = vector.load %arg4[%c14, %c0_57, %c0_58] : memref<16x128x32xf32, #tpu.memory_space<vmem>>, vector<1x128x32xf32>
    %74 = vector.shape_cast %73 : vector<1x128x32xf32> to vector<128x32xf32>
    %cst_59 = arith.constant dense<0.000000e+00> : vector<8x32xf32>
    %75 = tpu.matmul %30, %74, %cst_59 {dimension_numbers = #tpu.dot_dimension_numbers<[1], [0], [0], [1], [0, 0, 1, 1], [], []>} : vector<8x128xf32>, vector<128x32xf32>, vector<8x32xf32> -> vector<8x32xf32>
    %c15 = arith.constant 15 : index
    %c0_60 = arith.constant 0 : index
    %c0_61 = arith.constant 0 : index
    %76 = vector.load %arg4[%c15, %c0_60, %c0_61] : memref<16x128x32xf32, #tpu.memory_space<vmem>>, vector<1x128x32xf32>
    %77 = vector.shape_cast %76 : vector<1x128x32xf32> to vector<128x32xf32>
    %cst_62 = arith.constant dense<0.000000e+00> : vector<8x32xf32>
    %78 = tpu.matmul %30, %77, %cst_62 {dimension_numbers = #tpu.dot_dimension_numbers<[1], [0], [0], [1], [0, 0, 1, 1], [], []>} : vector<8x128xf32>, vector<128x32xf32>, vector<8x32xf32> -> vector<8x32xf32>
    %79 = tpu.concatenate %33, %36, %39, %42, %45, %48, %51, %54, %57, %60, %63, %66, %69, %72, %75, %78 in 0 : vector<8x32xf32>, vector<8x32xf32>, vector<8x32xf32>, vector<8x32xf32>, vector<8x32xf32>, vector<8x32xf32>, vector<8x32xf32>, vector<8x32xf32>, vector<8x32xf32>, vector<8x32xf32>, vector<8x32xf32>, vector<8x32xf32>, vector<8x32xf32>, vector<8x32xf32>, vector<8x32xf32>, vector<8x32xf32> -> vector<128x32xf32>
    %c0_63 = arith.constant 0 : index
    %c0_64 = arith.constant 0 : index
    %80 = vector.load %arg3[%c0_63, %c0_64] : memref<16x128xf32, #tpu.memory_space<vmem>>, vector<16x128xf32>
    %cst_65 = arith.constant dense<0.000000e+00> : vector<16x32xf32>
    %81 = tpu.matmul %80, %79, %cst_65 {dimension_numbers = #tpu.dot_dimension_numbers<[1], [0], [0], [1], [0, 0, 1, 1], [], []>} : vector<16x128xf32>, vector<128x32xf32>, vector<16x32xf32> -> vector<16x32xf32>
    %c8_66 = arith.constant 8 : index
    %c0_67 = arith.constant 0 : index
    %82 = vector.load %arg5[%c8_66, %c0_67] : memref<24x2xf32, #tpu.memory_space<vmem>>, vector<16x1xf32>
    %c8_68 = arith.constant 8 : index
    %c1_69 = arith.constant 1 : index
    %83 = vector.load %arg5[%c8_68, %c1_69] : memref<24x2xf32, #tpu.memory_space<vmem>>, vector<16x1xf32>
    %cst_70 = arith.constant dense<0.000000e+00> : vector<16xf32>
    %84 = vector.multi_reduction <add>, %81, %cst_70 [1] : vector<16x32xf32> to vector<16xf32>
    %85 = vector.shape_cast %84 : vector<16xf32> to vector<16x1xf32>
    %cst_71 = arith.constant 3.200000e+01 : f32
    %86 = vector.broadcast %cst_71 : f32 to vector<16x1xf32>
    %87 = arith.divf %85, %86 : vector<16x1xf32>
    %88 = arith.mulf %81, %81 : vector<16x32xf32>
    %cst_72 = arith.constant dense<0.000000e+00> : vector<16xf32>
    %89 = vector.multi_reduction <add>, %88, %cst_72 [1] : vector<16x32xf32> to vector<16xf32>
    %90 = vector.shape_cast %89 : vector<16xf32> to vector<16x1xf32>
    %cst_73 = arith.constant 3.200000e+01 : f32
    %91 = vector.broadcast %cst_73 : f32 to vector<16x1xf32>
    %92 = arith.divf %90, %91 : vector<16x1xf32>
    %93 = arith.mulf %87, %87 : vector<16x1xf32>
    %94 = arith.subf %92, %93 : vector<16x1xf32>
    %cst_74 = arith.constant 9.99999974E-6 : f32
    %95 = vector.broadcast %cst_74 : f32 to vector<16x1xf32>
    %96 = arith.addf %94, %95 : vector<16x1xf32>
    %97 = math.rsqrt %96 : vector<16x1xf32>
    %98 = arith.mulf %82, %97 : vector<16x1xf32>
    %99 = arith.mulf %87, %98 : vector<16x1xf32>
    %100 = arith.subf %83, %99 : vector<16x1xf32>
    %101 = vector.broadcast %98 : vector<16x1xf32> to vector<16x32xf32>
    %102 = arith.mulf %81, %101 : vector<16x32xf32>
    %103 = vector.broadcast %100 : vector<16x1xf32> to vector<16x32xf32>
    %104 = arith.addf %102, %103 : vector<16x32xf32>
    %cst_75 = arith.constant 0.000000e+00 : f32
    %105 = vector.broadcast %cst_75 : f32 to vector<16x32xf32>
    %106 = arith.cmpf oge, %104, %105 : vector<16x32xf32>
    %cst_76 = arith.constant 2.000000e-01 : f32
    %107 = vector.broadcast %cst_76 : f32 to vector<16x32xf32>
    %108 = arith.mulf %107, %104 : vector<16x32xf32>
    %109 = arith.select %106, %104, %108 : vector<16x32xi1>, vector<16x32xf32>
    %110 = vector.extract_strided_slice %109 {offsets = [0, 0], sizes = [16, 16], strides = [1, 1]} : vector<16x32xf32> to vector<16x16xf32>
    %c0_77 = arith.constant 0 : index
    %c0_78 = arith.constant 0 : index
    %c0_79 = arith.constant 0 : index
    %111 = vector.load %arg6[%c0_77, %c0_78, %c0_79] : memref<2x16x16xf32, #tpu.memory_space<vmem>>, vector<1x16x16xf32>
    %112 = vector.shape_cast %111 : vector<1x16x16xf32> to vector<16x16xf32>
    %113 = vector.shape_cast %110 : vector<16x16xf32> to vector<1x16x16xf32>
    tpu.vector_store %arg6[%c0_77, %c0_78, %c0_79], %113 {strides = array<i32>} : memref<2x16x16xf32, #tpu.memory_space<vmem>>, vector<1x16x16xf32>,
    %114 = vector.extract_strided_slice %109 {offsets = [0, 16], sizes = [16, 16], strides = [1, 1]} : vector<16x32xf32> to vector<16x16xf32>
    %c1_80 = arith.constant 1 : index
    %c0_81 = arith.constant 0 : index
    %c0_82 = arith.constant 0 : index
    %115 = vector.load %arg6[%c1_80, %c0_81, %c0_82] : memref<2x16x16xf32, #tpu.memory_space<vmem>>, vector<1x16x16xf32>
    %116 = vector.shape_cast %115 : vector<1x16x16xf32> to vector<16x16xf32>
    %117 = vector.shape_cast %114 : vector<16x16xf32> to vector<1x16x16xf32>
    tpu.vector_store %arg6[%c1_80, %c0_81, %c0_82], %117 {strides = array<i32>} : memref<2x16x16xf32, #tpu.memory_space<vmem>>, vector<1x16x16xf32>,
    return
  }
  func.func @transform_0(%arg0: i32) -> (i32, i32) {
    %c0_i32 = arith.constant 0 : i32
    %c0_i32_0 = arith.constant 0 : i32
    %c0_i32_1 = arith.constant 0 : i32
    return %c0_i32, %c0_i32_0 : i32, i32
  }
  func.func @transform_1(%arg0: i32) -> (i32, i32) {
    %c0_i32 = arith.constant 0 : i32
    %c0_i32_0 = arith.constant 0 : i32
    %c0_i32_1 = arith.constant 0 : i32
    return %c0_i32, %c0_i32_0 : i32, i32
  }
  func.func @transform_2(%arg0: i32) -> (i32, i32) {
    %c0_i32 = arith.constant 0 : i32
    %c0_i32_0 = arith.constant 0 : i32
    %c0_i32_1 = arith.constant 0 : i32
    return %c0_i32, %c0_i32_0 : i32, i32
  }
  func.func @transform_3(%arg0: i32) -> (i32, i32, i32) {
    %c0_i32 = arith.constant 0 : i32
    %c0_i32_0 = arith.constant 0 : i32
    %c0_i32_1 = arith.constant 0 : i32
    %c0_i32_2 = arith.constant 0 : i32
    return %c0_i32, %c0_i32_0, %c0_i32_1 : i32, i32, i32
  }
  func.func @transform_4(%arg0: i32) -> (i32, i32) {
    %c0_i32 = arith.constant 0 : i32
    %c0_i32_0 = arith.constant 0 : i32
    %c0_i32_1 = arith.constant 0 : i32
    return %c0_i32, %c0_i32_0 : i32, i32
  }
  func.func @transform_5(%arg0: i32) -> (i32, i32, i32) {
    %c0_i32 = arith.constant 0 : i32
    %c0_i32_0 = arith.constant 0 : i32
    %c0_i32_1 = arith.constant 0 : i32
    %c0_i32_2 = arith.constant 0 : i32
    return %c0_i32, %c0_i32_0, %c0_i32_1 : i32, i32, i32
  }
}

</mosaic_0001>

<llo_original>
// kernel: denoiser_special2_forward.1
$region0: #{denoiser_special2_forward.1}
  #allocation0 [shape = 'u32[]', space=smem, size = 0x4, offset = 0x4, fixed_abs, tag = 'smem constant byte address 0x4 - core index']
  #allocation1 [shape = 'u32[144,128]{1,0:T(1,128)}', space=vmem, size = 0x12000, scoped, tag = 'internal scratch']
  %s0 = inlined_call_operand.vmem [shape: f32[64,128], index: 0, kind: input, shape index: {}]
  %s1 = inlined_call_operand.vmem [shape: f32[8,64], index: 1, kind: input, shape index: {}]
  %s2 = inlined_call_operand.vmem [shape: f32[16,128], index: 2, kind: input, shape index: {}]
  %s3 = inlined_call_operand.vmem [shape: f32[16,128,32], index: 3, kind: input, shape index: {}]
  %s4 = inlined_call_operand.vmem [shape: f32[24,2], index: 4, kind: input, shape index: {}]
  %s5 = inlined_call_operand.vmem [shape: f32[2,16,16], index: 5, kind: output, shape index: {}]
  %s6 = sld [smem:[#allocation0]]
  $region30: #{denoiser_special2_forward.1} parent=0
    _
  %s8 = ssub.s32 1, %s6
  %s9 = scalar_select 0, %s8, %s6
  // Predicated region
  $region2: #{denoiser_special2_forward.1} parent=0 // pred_check
    _
  $region3: #{denoiser_special2_forward.1} parent=0 // pred_check_branch
    %11 = sbr.rel (0) target = $region5
  $region4: #{denoiser_special2_forward.1} parent=0 // pred_region
    _
  $region5: #{denoiser_special2_forward.1} parent=0 // pred_fallthru
    _
  // Predicated region
  $region6: #{denoiser_special2_forward.1} parent=0 // pred_check
    _
  $region7: #{denoiser_special2_forward.1} parent=0 // pred_check_branch
    %13 = sbr.rel (0) target = $region9
  $region8: #{denoiser_special2_forward.1} parent=0 // pred_region
    _
  $region9: #{denoiser_special2_forward.1} parent=0 // pred_fallthru
    _
  // Predicated region
  $region10: #{denoiser_special2_forward.1} parent=0 // pred_check
    _
  $region11: #{denoiser_special2_forward.1} parent=0 // pred_check_branch
    %15 = sbr.rel (0) target = $region13
  $region12: #{denoiser_special2_forward.1} parent=0 // pred_region
    _
  $region13: #{denoiser_special2_forward.1} parent=0 // pred_fallthru
    _
  // Predicated region
  $region14: #{denoiser_special2_forward.1} parent=0 // pred_check
    _
  $region15: #{denoiser_special2_forward.1} parent=0 // pred_check_branch
    %17 = sbr.rel (0) target = $region17
  $region16: #{denoiser_special2_forward.1} parent=0 // pred_region
    _
  $region17: #{denoiser_special2_forward.1} parent=0 // pred_fallthru
    _
  // Predicated region
  $region18: #{denoiser_special2_forward.1} parent=0 // pred_check
    _
  $region19: #{denoiser_special2_forward.1} parent=0 // pred_check_branch
    %19 = sbr.rel (0) target = $region21
  $region20: #{denoiser_special2_forward.1} parent=0 // pred_region
    _
  $region21: #{denoiser_special2_forward.1} parent=0 // pred_fallthru
    _
  %v20 = vld [vmem:[%s1] sm:$0xff]
  %v21 = vld [vmem:[%s0] sm:$0xff]
  %v22 = vld [vmem:[%s0 + $0x8] sm:$0xff]
  %v23 = vld [vmem:[%s0 + $0x10] sm:$0xff]
  %v24 = vld [vmem:[%s0 + $0x18] sm:$0xff]
  %v25 = vld [vmem:[%s0 + $0x20] sm:$0xff]
  %v26 = vld [vmem:[%s0 + $0x28] sm:$0xff]
  %v27 = vld [vmem:[%s0 + $0x30] sm:$0xff]
  %v28 = vld [vmem:[%s0 + $0x38] sm:$0xff]
  %vm29 = vcmask 523264
  %v31 = vsel %vm29, %v20, 0
  %33 = vmatprep.subr.mxu0 0.0
  %34 = vmatpush1.msra.mxu0 %v21
  %35 = vmatprep.subr.mxu0 0.0
  %36 = vmatpush1.msra.mxu0 %v22
  %37 = vmatprep.subr.mxu0 0.0
  %38 = vmatpush1.msra.mxu0 %v23
  %39 = vmatprep.subr.mxu0 0.0
  %40 = vmatpush1.msra.mxu0 %v24
  %41 = vmatprep.subr.mxu0 0.0
  %42 = vmatpush1.msra.mxu0 %v25
  %43 = vmatprep.subr.mxu0 0.0
  %44 = vmatpush1.msra.mxu0 %v26
  %45 = vmatprep.subr.mxu0 0.0
  %46 = vmatpush1.msra.mxu0 %v27
  %47 = vmatprep.subr.mxu0 0.0
  %48 = vmatpush1.msra.mxu0 %v28
  %49 = vmatprep.subr.mxu0 0.0
  %50 = vmatpush1.msra.mxu0 0.0
  %51 = vmatprep.subr.mxu0 0.0
  %52 = vmatpush1.msra.mxu0 0.0
  %53 = vmatprep.subr.mxu0 0.0
  %54 = vmatpush1.msra.mxu0 0.0
  %55 = vmatprep.subr.mxu0 0.0
  %56 = vmatpush1.msra.mxu0 0.0
  %57 = vmatprep.subr.mxu0 0.0
  %58 = vmatpush1.msra.mxu0 0.0
  %59 = vmatprep.subr.mxu0 0.0
  %60 = vmatpush1.msra.mxu0 0.0
  %61 = vmatprep.subr.mxu0 0.0
  %62 = vmatpush1.msra.mxu0 0.0
  %63 = vmatprep.subr.mxu0 0.0
  %64 = vmatpush1.msra.mxu0 0.0
  %65 = vmatprep.subr.mxu0 0.0
  %66 = vmatpush1.msra.mxu0 0.0
  %67 = vmatprep.subr.mxu0 0.0
  %68 = vmatpush1.msra.mxu0 0.0
  %69 = vmatprep.subr.mxu0 0.0
  %70 = vmatpush1.msra.mxu0 0.0
  %71 = vmatprep.subr.mxu0 0.0
  %72 = vmatpush1.msra.mxu0 0.0
  %73 = vmatprep.subr.mxu0 0.0
  %74 = vmatpush1.msra.mxu0 0.0
  %75 = vmatprep.subr.mxu0 0.0
  %76 = vmatpush1.msra.mxu0 0.0
  %77 = vmatprep.subr.mxu0 0.0
  %78 = vmatpush1.msra.mxu0 0.0
  %79 = vmatprep.subr.mxu0 0.0
  %80 = vmatpush1.msra.mxu0 0.0
  %81 = vmatprep.subr.mxu0 0.0
  %82 = vmatpush1.msra.mxu0 0.0
  %83 = vmatprep.subr.mxu0 0.0
  %84 = vmatpush1.msra.mxu0 0.0
  %85 = vmatprep.subr.mxu0 0.0
  %86 = vmatpush1.msra.mxu0 0.0
  %87 = vmatprep.subr.mxu0 0.0
  %88 = vmatpush1.msra.mxu0 0.0
  %89 = vmatprep.subr.mxu0 0.0
  %90 = vmatpush1.msra.mxu0 0.0
  %91 = vmatprep.subr.mxu0 0.0
  %92 = vmatpush1.msra.mxu0 0.0
  %93 = vmatprep.subr.mxu0 0.0
  %94 = vmatpush1.msra.mxu0 0.0
  %95 = vmatprep.subr.mxu0 0.0
  %96 = vmatpush1.msra.mxu0 0.0
  %97 = vmatprep.mubr.f32.mxu0 0.0
  %98 = vmatmul.mubr.f32.gmra.mrb[0].mxu0 %v31
  %v99 = vpop.f32.mrb[0].mxu0
  %v100 = vadd.f32 0.0, %v99
  %v101 = vpop.f32.mrb[0].mxu0
  %102 = vdwg.mxu0
  %v103 = vld [vmem:[%s4] sm:$0xff]
  %104 = vadd.xlane.f32.xlu0 %v100
  %v105 = vpop.xlane.xlu0 %104
  %v106 = vrcp.pop 128.0
  %v107 = vmul.f32 %v105, %v106
  %v108 = vmul.f32 %v100, %v100
  %109 = vadd.xlane.f32.xlu0 %v108
  %v110 = vpop.xlane.xlu0 %109
  %v111 = vmul.f32 %v110, %v106
  %v112 = vmul.f32 %v107, %v107
  %v113 = vsub.f32 %v111, %v112
  %v114 = vadd.f32 %v113, 1e-05
  %v115 = vrsqrt.pop %v114
  %v116 = vmul.f32 %v103, %v115
  %v117 = vmul.f32 %v107, %v116
  %119 = vrot.lane.b32.xlu0 %v117, 1
  %v120 = vpop.permute.xlu0 %119
  %v122 = vsub.f32 %v103, %v120
  %124 = vset.pattern.permute.xlu0 0
  %125 = vperm.xlu0 %124, %v116
  %v126 = vpop.permute.xlu0 %125
  %v128 = vmul.f32 %v100, %v126
  %130 = vset.pattern.permute.xlu0 1
  %131 = vperm.xlu0 %130, %v122
  %v132 = vpop.permute.xlu0 %131
  %v134 = vadd.f32 %v128, %v132
  %vm135 = vcmp.ge.f32.partialorder %v134, 0.0
  %v136 = vmul.f32 %v134, 0.2
  %v137 = vsel %vm135, %v134, %v136
  %v138 = vld [vmem:[%s3] sm:$0xff]
  %v139 = vld [vmem:[%s3 + $0x8] sm:$0xff]
  %v140 = vld [vmem:[%s3 + $0x10] sm:$0xff]
  %v141 = vld [vmem:[%s3 + $0x18] sm:$0xff]
  %v142 = vld [vmem:[%s3 + $0x20] sm:$0xff]
  %v143 = vld [vmem:[%s3 + $0x28] sm:$0xff]
  %v144 = vld [vmem:[%s3 + $0x30] sm:$0xff]
  %v145 = vld [vmem:[%s3 + $0x38] sm:$0xff]
  %v146 = vld [vmem:[%s3 + $0x40] sm:$0xff]
  %v147 = vld [vmem:[%s3 + $0x48] sm:$0xff]
  %v148 = vld [vmem:[%s3 + $0x50] sm:$0xff]
  %v149 = vld [vmem:[%s3 + $0x58] sm:$0xff]
  %v150 = vld [vmem:[%s3 + $0x60] sm:$0xff]
  %v151 = vld [vmem:[%s3 + $0x68] sm:$0xff]
  %v152 = vld [vmem:[%s3 + $0x70] sm:$0xff]
  %v153 = vld [vmem:[%s3 + $0x78] sm:$0xff]
  %154 = vmatprep.subr.mxu0 0.0
  %155 = vmatpush1.msra.mxu0 %v138
  %156 = vmatprep.subr.mxu0 0.0
  %157 = vmatpush1.msra.mxu0 %v139
  %158 = vmatprep.subr.mxu0 0.0
  %159 = vmatpush1.msra.mxu0 %v140
  %160 = vmatprep.subr.mxu0 0.0
  %161 = vmatpush1.msra.mxu0 %v141
  %162 = vmatprep.subr.mxu0 0.0
  %163 = vmatpush1.msra.mxu0 %v142
  %164 = vmatprep.subr.mxu0 0.0
  %165 = vmatpush1.msra.mxu0 %v143
  %166 = vmatprep.subr.mxu0 0.0
  %167 = vmatpush1.msra.mxu0 %v144
  %168 = vmatprep.subr.mxu0 0.0
  %169 = vmatpush1.msra.mxu0 %v145
  %170 = vmatprep.subr.mxu0 0.0
  %171 = vmatpush1.msra.mxu0 %v146
  %172 = vmatprep.subr.mxu0 0.0
  %173 = vmatpush1.msra.mxu0 %v147
  %174 = vmatprep.subr.mxu0 0.0
  %175 = vmatpush1.msra.mxu0 %v148
  %176 = vmatprep.subr.mxu0 0.0
  %177 = vmatpush1.msra.mxu0 %v149
  %178 = vmatprep.subr.mxu0 0.0
  %179 = vmatpush1.msra.mxu0 %v150
  %180 = vmatprep.subr.mxu0 0.0
  %181 = vmatpush1.msra.mxu0 %v151
  %182 = vmatprep.subr.mxu0 0.0
  %183 = vmatpush1.msra.mxu0 %v152
  %184 = vmatprep.subr.mxu0 0.0
  %185 = vmatpush1.msra.mxu0 %v153
  %186 = vmatprep.subr.mxu0 0.0
  %187 = vmatpush1.msra.mxu0 0.0
  %188 = vmatprep.subr.mxu0 0.0
  %189 = vmatpush1.msra.mxu0 0.0
  %190 = vmatprep.subr.mxu0 0.0
  %191 = vmatpush1.msra.mxu0 0.0
  %192 = vmatprep.subr.mxu0 0.0
  %193 = vmatpush1.msra.mxu0 0.0
  %194 = vmatprep.subr.mxu0 0.0
  %195 = vmatpush1.msra.mxu0 0.0
  %196 = vmatprep.subr.mxu0 0.0
  %197 = vmatpush1.msra.mxu0 0.0
  %198 = vmatprep.subr.mxu0 0.0
  %199 = vmatpush1.msra.mxu0 0.0
  %200 = vmatprep.subr.mxu0 0.0
  %201 = vmatpush1.msra.mxu0 0.0
  %202 = vmatprep.subr.mxu0 0.0
  %203 = vmatpush1.msra.mxu0 0.0
  %204 = vmatprep.subr.mxu0 0.0
  %205 = vmatpush1.msra.mxu0 0.0
  %206 = vmatprep.subr.mxu0 0.0
  %207 = vmatpush1.msra.mxu0 0.0
  %208 = vmatprep.subr.mxu0 0.0
  %209 = vmatpush1.msra.mxu0 0.0
  %210 = vmatprep.subr.mxu0 0.0
  %211 = vmatpush1.msra.mxu0 0.0
  %212 = vmatprep.subr.mxu0 0.0
  %213 = vmatpush1.msra.mxu0 0.0
  %214 = vmatprep.subr.mxu0 0.0
  %215 = vmatpush1.msra.mxu0 0.0
  %216 = vmatprep.subr.mxu0 0.0
  %217 = vmatpush1.msra.mxu0 0.0
  %218 = vmatprep.mubr.f32.mxu0 0.0
  %219 = vmatmul.mubr.f32.gmra.mrb[0].mxu0 %v137
  %v220 = vpop.f32.mrb[0].mxu0
  %v221 = vadd.f32 0.0, %v220
  %v222 = vpop.f32.mrb[0].mxu0
  %223 = vdwg.mxu0
  %s224 = scalar_lea.vmem %s3, 128
  %v225 = vld [vmem:[%s224] sm:$0xff]
  %v226 = vld [vmem:[%s224 + $0x8] sm:$0xff]
  %v227 = vld [vmem:[%s224 + $0x10] sm:$0xff]
  %v228 = vld [vmem:[%s224 + $0x18] sm:$0xff]
  %v229 = vld [vmem:[%s224 + $0x20] sm:$0xff]
  %v230 = vld [vmem:[%s224 + $0x28] sm:$0xff]
  %v231 = vld [vmem:[%s224 + $0x30] sm:$0xff]
  %v232 = vld [vmem:[%s224 + $0x38] sm:$0xff]
  %v233 = vld [vmem:[%s224 + $0x40] sm:$0xff]
  %v234 = vld [vmem:[%s224 + $0x48] sm:$0xff]
  %v235 = vld [vmem:[%s224 + $0x50] sm:$0xff]
  %v236 = vld [vmem:[%s224 + $0x58] sm:$0xff]
  %v237 = vld [vmem:[%s224 + $0x60] sm:$0xff]
  %v238 = vld [vmem:[%s224 + $0x68] sm:$0xff]
  %v239 = vld [vmem:[%s224 + $0x70] sm:$0xff]
  %v240 = vld [vmem:[%s224 + $0x78] sm:$0xff]
  %241 = vmatprep.subr.mxu0 0.0
  %242 = vmatpush1.msra.mxu0 %v225
  %243 = vmatprep.subr.mxu0 0.0
  %244 = vmatpush1.msra.mxu0 %v226
  %245 = vmatprep.subr.mxu0 0.0
  %246 = vmatpush1.msra.mxu0 %v227
  %247 = vmatprep.subr.mxu0 0.0
  %248 = vmatpush1.msra.mxu0 %v228
  %249 = vmatprep.subr.mxu0 0.0
  %250 = vmatpush1.msra.mxu0 %v229
  %251 = vmatprep.subr.mxu0 0.0
  %252 = vmatpush1.msra.mxu0 %v230
  %253 = vmatprep.subr.mxu0 0.0
  %254 = vmatpush1.msra.mxu0 %v231
  %255 = vmatprep.subr.mxu0 0.0
  %256 = vmatpush1.msra.mxu0 %v232
  %257 = vmatprep.subr.mxu0 0.0
  %258 = vmatpush1.msra.mxu0 %v233
  %259 = vmatprep.subr.mxu0 0.0
  %260 = vmatpush1.msra.mxu0 %v234
  %261 = vmatprep.subr.mxu0 0.0
  %262 = vmatpush1.msra.mxu0 %v235
  %263 = vmatprep.subr.mxu0 0.0
  %264 = vmatpush1.msra.mxu0 %v236
  %265 = vmatprep.subr.mxu0 0.0
  %266 = vmatpush1.msra.mxu0 %v237
  %267 = vmatprep.subr.mxu0 0.0
  %268 = vmatpush1.msra.mxu0 %v238
  %269 = vmatprep.subr.mxu0 0.0
  %270 = vmatpush1.msra.mxu0 %v239
  %271 = vmatprep.subr.mxu0 0.0
  %272 = vmatpush1.msra.mxu0 %v240
  %273 = vmatprep.subr.mxu0 0.0
  %274 = vmatpush1.msra.mxu0 0.0
  %275 = vmatprep.subr.mxu0 0.0
  %276 = vmatpush1.msra.mxu0 0.0
  %277 = vmatprep.subr.mxu0 0.0
  %278 = vmatpush1.msra.mxu0 0.0
  %279 = vmatprep.subr.mxu0 0.0
  %280 = vmatpush1.msra.mxu0 0.0
  %281 = vmatprep.subr.mxu0 0.0
  %282 = vmatpush1.msra.mxu0 0.0
  %283 = vmatprep.subr.mxu0 0.0
  %284 = vmatpush1.msra.mxu0 0.0
  %285 = vmatprep.subr.mxu0 0.0
  %286 = vmatpush1.msra.mxu0 0.0
  %287 = vmatprep.subr.mxu0 0.0
  %288 = vmatpush1.msra.mxu0 0.0
  %289 = vmatprep.subr.mxu0 0.0
  %290 = vmatpush1.msra.mxu0 0.0
  %291 = vmatprep.subr.mxu0 0.0
  %292 = vmatpush1.msra.mxu0 0.0
  %293 = vmatprep.subr.mxu0 0.0
  %294 = vmatpush1.msra.mxu0 0.0
  %295 = vmatprep.subr.mxu0 0.0
  %296 = vmatpush1.msra.mxu0 0.0
  %297 = vmatprep.subr.mxu0 0.0
  %298 = vmatpush1.msra.mxu0 0.0
  %299 = vmatprep.subr.mxu0 0.0
  %300 = vmatpush1.msra.mxu0 0.0
  %301 = vmatprep.subr.mxu0 0.0
  %302 = vmatpush1.msra.mxu0 0.0
  %303 = vmatprep.subr.mxu0 0.0
  %304 = vmatpush1.msra.mxu0 0.0
  %305 = vmatprep.mubr.f32.mxu0 0.0
  %306 = vmatmul.mubr.f32.gmra.mrb[0].mxu0 %v137
  %v307 = vpop.f32.mrb[0].mxu0
  %v308 = vadd.f32 0.0, %v307
  %v309 = vpop.f32.mrb[0].mxu0
  %310 = vdwg.mxu0
  %s311 = scalar_lea.vmem %s3, 256
  %v312 = vld [vmem:[%s311] sm:$0xff]
  %v313 = vld [vmem:[%s311 + $0x8] sm:$0xff]
  %v314 = vld [vmem:[%s311 + $0x10] sm:$0xff]
  %v315 = vld [vmem:[%s311 + $0x18] sm:$0xff]
  %v316 = vld [vmem:[%s311 + $0x20] sm:$0xff]
  %v317 = vld [vmem:[%s311 + $0x28] sm:$0xff]
  %v318 = vld [vmem:[%s311 + $0x30] sm:$0xff]
  %v319 = vld [vmem:[%s311 + $0x38] sm:$0xff]
  %v320 = vld [vmem:[%s311 + $0x40] sm:$0xff]
  %v321 = vld [vmem:[%s311 + $0x48] sm:$0xff]
  %v322 = vld [vmem:[%s311 + $0x50] sm:$0xff]
  %v323 = vld [vmem:[%s311 + $0x58] sm:$0xff]
  %v324 = vld [vmem:[%s311 + $0x60] sm:$0xff]
  %v325 = vld [vmem:[%s311 + $0x68] sm:$0xff]
  %v326 = vld [vmem:[%s311 + $0x70] sm:$0xff]
  %v327 = vld [vmem:[%s311 + $0x78] sm:$0xff]
  %328 = vmatprep.subr.mxu0 0.0
  %329 = vmatpush1.msra.mxu0 %v312
  %330 = vmatprep.subr.mxu0 0.0
  %331 = vmatpush1.msra.mxu0 %v313
  %332 = vmatprep.subr.mxu0 0.0
  %333 = vmatpush1.msra.mxu0 %v314
  %334 = vmatprep.subr.mxu0 0.0
  %335 = vmatpush1.msra.mxu0 %v315
  %336 = vmatprep.subr.mxu0 0.0
  %337 = vmatpush1.msra.mxu0 %v316
  %338 = vmatprep.subr.mxu0 0.0
  %339 = vmatpush1.msra.mxu0 %v317
  %340 = vmatprep.subr.mxu0 0.0
  %341 = vmatpush1.msra.mxu0 %v318
  %342 = vmatprep.subr.mxu0 0.0
  %343 = vmatpush1.msra.mxu0 %v319
  %344 = vmatprep.subr.mxu0 0.0
  %345 = vmatpush1.msra.mxu0 %v320
  %346 = vmatprep.subr.mxu0 0.0
  %347 = vmatpush1.msra.mxu0 %v321
  %348 = vmatprep.subr.mxu0 0.0
  %349 = vmatpush1.msra.mxu0 %v322
  %350 = vmatprep.subr.mxu0 0.0
  %351 = vmatpush1.msra.mxu0 %v323
  %352 = vmatprep.subr.mxu0 0.0
  %353 = vmatpush1.msra.mxu0 %v324
  %354 = vmatprep.subr.mxu0 0.0
  %355 = vmatpush1.msra.mxu0 %v325
  %356 = vmatprep.subr.mxu0 0.0
  %357 = vmatpush1.msra.mxu0 %v326
  %358 = vmatprep.subr.mxu0 0.0
  %359 = vmatpush1.msra.mxu0 %v327
  %360 = vmatprep.subr.mxu0 0.0
  %361 = vmatpush1.msra.mxu0 0.0
  %362 = vmatprep.subr.mxu0 0.0
  %363 = vmatpush1.msra.mxu0 0.0
  %364 = vmatprep.subr.mxu0 0.0
  %365 = vmatpush1.msra.mxu0 0.0
  %366 = vmatprep.subr.mxu0 0.0
  %367 = vmatpush1.msra.mxu0 0.0
  %368 = vmatprep.subr.mxu0 0.0
  %369 = vmatpush1.msra.mxu0 0.0
  %370 = vmatprep.subr.mxu0 0.0
  %371 = vmatpush1.msra.mxu0 0.0
  %372 = vmatprep.subr.mxu0 0.0
  %373 = vmatpush1.msra.mxu0 0.0
  %374 = vmatprep.subr.mxu0 0.0
  %375 = vmatpush1.msra.mxu0 0.0
  %376 = vmatprep.subr.mxu0 0.0
  %377 = vmatpush1.msra.mxu0 0.0
  %378 = vmatprep.subr.mxu0 0.0
  %379 = vmatpush1.msra.mxu0 0.0
  %380 = vmatprep.subr.mxu0 0.0
  %381 = vmatpush1.msra.mxu0 0.0
  %382 = vmatprep.subr.mxu0 0.0
  %383 = vmatpush1.msra.mxu0 0.0
  %384 = vmatprep.subr.mxu0 0.0
  %385 = vmatpush1.msra.mxu0 0.0
  %386 = vmatprep.subr.mxu0 0.0
  %387 = vmatpush1.msra.mxu0 0.0
  %388 = vmatprep.subr.mxu0 0.0
  %389 = vmatpush1.msra.mxu0 0.0
  %390 = vmatprep.subr.mxu0 0.0
  %391 = vmatpush1.msra.mxu0 0.0
  %392 = vmatprep.mubr.f32.mxu0 0.0
  %393 = vmatmul.mubr.f32.gmra.mrb[0].mxu0 %v137
  %v394 = vpop.f32.mrb[0].mxu0
  %v395 = vadd.f32 0.0, %v394
  %v396 = vpop.f32.mrb[0].mxu0
  %397 = vdwg.mxu0
  %s398 = scalar_lea.vmem %s3, 384
  %v399 = vld [vmem:[%s398] sm:$0xff]
  %v400 = vld [vmem:[%s398 + $0x8] sm:$0xff]
  %v401 = vld [vmem:[%s398 + $0x10] sm:$0xff]
  %v402 = vld [vmem:[%s398 + $0x18] sm:$0xff]
  %v403 = vld [vmem:[%s398 + $0x20] sm:$0xff]
  %v404 = vld [vmem:[%s398 + $0x28] sm:$0xff]
  %v405 = vld [vmem:[%s398 + $0x30] sm:$0xff]
  %v406 = vld [vmem:[%s398 + $0x38] sm:$0xff]
  %v407 = vld [vmem:[%s398 + $0x40] sm:$0xff]
  %v408 = vld [vmem:[%s398 + $0x48] sm:$0xff]
  %v409 = vld [vmem:[%s398 + $0x50] sm:$0xff]
  %v410 = vld [vmem:[%s398 + $0x58] sm:$0xff]
  %v411 = vld [vmem:[%s398 + $0x60] sm:$0xff]
  %v412 = vld [vmem:[%s398 + $0x68] sm:$0xff]
  %v413 = vld [vmem:[%s398 + $0x70] sm:$0xff]
  %v414 = vld [vmem:[%s398 + $0x78] sm:$0xff]
  %415 = vmatprep.subr.mxu0 0.0
  %416 = vmatpush1.msra.mxu0 %v399
  %417 = vmatprep.subr.mxu0 0.0
  %418 = vmatpush1.msra.mxu0 %v400
  %419 = vmatprep.subr.mxu0 0.0
  %420 = vmatpush1.msra.mxu0 %v401
  %421 = vmatprep.subr.mxu0 0.0
  %422 = vmatpush1.msra.mxu0 %v402
  %423 = vmatprep.subr.mxu0 0.0
  %424 = vmatpush1.msra.mxu0 %v403
  %425 = vmatprep.subr.mxu0 0.0
  %426 = vmatpush1.msra.mxu0 %v404
  %427 = vmatprep.subr.mxu0 0.0
  %428 = vmatpush1.msra.mxu0 %v405
  %429 = vmatprep.subr.mxu0 0.0
  %430 = vmatpush1.msra.mxu0 %v406
  %431 = vmatprep.subr.mxu0 0.0
  %432 = vmatpush1.msra.mxu0 %v407
  %433 = vmatprep.subr.mxu0 0.0
  %434 = vmatpush1.msra.mxu0 %v408
  %435 = vmatprep.subr.mxu0 0.0
  %436 = vmatpush1.msra.mxu0 %v409
  %437 = vmatprep.subr.mxu0 0.0
  %438 = vmatpush1.msra.mxu0 %v410
  %439 = vmatprep.subr.mxu0 0.0
  %440 = vmatpush1.msra.mxu0 %v411
  %441 = vmatprep.subr.mxu0 0.0
  %442 = vmatpush1.msra.mxu0 %v412
  %443 = vmatprep.subr.mxu0 0.0
  %444 = vmatpush1.msra.mxu0 %v413
  %445 = vmatprep.subr.mxu0 0.0
  %446 = vmatpush1.msra.mxu0 %v414
  %447 = vmatprep.subr.mxu0 0.0
  %448 = vmatpush1.msra.mxu0 0.0
  %449 = vmatprep.subr.mxu0 0.0
  %450 = vmatpush1.msra.mxu0 0.0
  %451 = vmatprep.subr.mxu0 0.0
  %452 = vmatpush1.msra.mxu0 0.0
  %453 = vmatprep.subr.mxu0 0.0
  %454 = vmatpush1.msra.mxu0 0.0
  %455 = vmatprep.subr.mxu0 0.0
  %456 = vmatpush1.msra.mxu0 0.0
  %457 = vmatprep.subr.mxu0 0.0
  %458 = vmatpush1.msra.mxu0 0.0
  %459 = vmatprep.subr.mxu0 0.0
  %460 = vmatpush1.msra.mxu0 0.0
  %461 = vmatprep.subr.mxu0 0.0
  %462 = vmatpush1.msra.mxu0 0.0
  %463 = vmatprep.subr.mxu0 0.0
  %464 = vmatpush1.msra.mxu0 0.0
  %465 = vmatprep.subr.mxu0 0.0
  %466 = vmatpush1.msra.mxu0 0.0
  %467 = vmatprep.subr.mxu0 0.0
  %468 = vmatpush1.msra.mxu0 0.0
  %469 = vmatprep.subr.mxu0 0.0
  %470 = vmatpush1.msra.mxu0 0.0
  %471 = vmatprep.subr.mxu0 0.0
  %472 = vmatpush1.msra.mxu0 0.0
  %473 = vmatprep.subr.mxu0 0.0
  %474 = vmatpush1.msra.mxu0 0.0
  %475 = vmatprep.subr.mxu0 0.0
  %476 = vmatpush1.msra.mxu0 0.0
  %477 = vmatprep.subr.mxu0 0.0
  %478 = vmatpush1.msra.mxu0 0.0
  %479 = vmatprep.mubr.f32.mxu0 0.0
  %480 = vmatmul.mubr.f32.gmra.mrb[0].mxu0 %v137
  %v481 = vpop.f32.mrb[0].mxu0
  %v482 = vadd.f32 0.0, %v481
  %v483 = vpop.f32.mrb[0].mxu0
  %484 = vdwg.mxu0
  %s485 = scalar_lea.vmem %s3, 512
  %v486 = vld [vmem:[%s485] sm:$0xff]
  %v487 = vld [vmem:[%s485 + $0x8] sm:$0xff]
  %v488 = vld [vmem:[%s485 + $0x10] sm:$0xff]
  %v489 = vld [vmem:[%s485 + $0x18] sm:$0xff]
  %v490 = vld [vmem:[%s485 + $0x20] sm:$0xff]
  %v491 = vld [vmem:[%s485 + $0x28] sm:$0xff]
  %v492 = vld [vmem:[%s485 + $0x30] sm:$0xff]
  %v493 = vld [vmem:[%s485 + $0x38] sm:$0xff]
  %v494 = vld [vmem:[%s485 + $0x40] sm:$0xff]
  %v495 = vld [vmem:[%s485 + $0x48] sm:$0xff]
  %v496 = vld [vmem:[%s485 + $0x50] sm:$0xff]
  %v497 = vld [vmem:[%s485 + $0x58] sm:$0xff]
  %v498 = vld [vmem:[%s485 + $0x60] sm:$0xff]
  %v499 = vld [vmem:[%s485 + $0x68] sm:$0xff]
  %v500 = vld [vmem:[%s485 + $0x70] sm:$0xff]
  %v501 = vld [vmem:[%s485 + $0x78] sm:$0xff]
  %502 = vmatprep.subr.mxu0 0.0
  %503 = vmatpush1.msra.mxu0 %v486
  %504 = vmatprep.subr.mxu0 0.0
  %505 = vmatpush1.msra.mxu0 %v487
  %506 = vmatprep.subr.mxu0 0.0
  %507 = vmatpush1.msra.mxu0 %v488
  %508 = vmatprep.subr.mxu0 0.0
  %509 = vmatpush1.msra.mxu0 %v489
  %510 = vmatprep.subr.mxu0 0.0
  %511 = vmatpush1.msra.mxu0 %v490
  %512 = vmatprep.subr.mxu0 0.0
  %513 = vmatpush1.msra.mxu0 %v491
  %514 = vmatprep.subr.mxu0 0.0
  %515 = vmatpush1.msra.mxu0 %v492
  %516 = vmatprep.subr.mxu0 0.0
  %517 = vmatpush1.msra.mxu0 %v493
  %518 = vmatprep.subr.mxu0 0.0
  %519 = vmatpush1.msra.mxu0 %v494
  %520 = vmatprep.subr.mxu0 0.0
  %521 = vmatpush1.msra.mxu0 %v495
  %522 = vmatprep.subr.mxu0 0.0
  %523 = vmatpush1.msra.mxu0 %v496
  %524 = vmatprep.subr.mxu0 0.0
  %525 = vmatpush1.msra.mxu0 %v497
  %526 = vmatprep.subr.mxu0 0.0
  %527 = vmatpush1.msra.mxu0 %v498
  %528 = vmatprep.subr.mxu0 0.0
  %529 = vmatpush1.msra.mxu0 %v499
  %530 = vmatprep.subr.mxu0 0.0
  %531 = vmatpush1.msra.mxu0 %v500
  %532 = vmatprep.subr.mxu0 0.0
  %533 = vmatpush1.msra.mxu0 %v501
  %534 = vmatprep.subr.mxu0 0.0
  %535 = vmatpush1.msra.mxu0 0.0
  %536 = vmatprep.subr.mxu0 0.0
  %537 = vmatpush1.msra.mxu0 0.0
  %538 = vmatprep.subr.mxu0 0.0
  %539 = vmatpush1.msra.mxu0 0.0
  %540 = vmatprep.subr.mxu0 0.0
  %541 = vmatpush1.msra.mxu0 0.0
  %542 = vmatprep.subr.mxu0 0.0
  %543 = vmatpush1.msra.mxu0 0.0
  %544 = vmatprep.subr.mxu0 0.0
  %545 = vmatpush1.msra.mxu0 0.0
  %546 = vmatprep.subr.mxu0 0.0
  %547 = vmatpush1.msra.mxu0 0.0
  %548 = vmatprep.subr.mxu0 0.0
  %549 = vmatpush1.msra.mxu0 0.0
  %550 = vmatprep.subr.mxu0 0.0
  %551 = vmatpush1.msra.mxu0 0.0
  %552 = vmatprep.subr.mxu0 0.0
  %553 = vmatpush1.msra.mxu0 0.0
  %554 = vmatprep.subr.mxu0 0.0
  %555 = vmatpush1.msra.mxu0 0.0
  %556 = vmatprep.subr.mxu0 0.0
  %557 = vmatpush1.msra.mxu0 0.0
  %558 = vmatprep.subr.mxu0 0.0
  %559 = vmatpush1.msra.mxu0 0.0
  %560 = vmatprep.subr.mxu0 0.0
  %561 = vmatpush1.msra.mxu0 0.0
  %562 = vmatprep.subr.mxu0 0.0
  %563 = vmatpush1.msra.mxu0 0.0
  %564 = vmatprep.subr.mxu0 0.0
  %565 = vmatpush1.msra.mxu0 0.0
  %566 = vmatprep.mubr.f32.mxu0 0.0
  %567 = vmatmul.mubr.f32.gmra.mrb[0].mxu0 %v137
  %v568 = vpop.f32.mrb[0].mxu0
  %v569 = vadd.f32 0.0, %v568
  %v570 = vpop.f32.mrb[0].mxu0
  %571 = vdwg.mxu0
  %s572 = scalar_lea.vmem %s3, 640
  %v573 = vld [vmem:[%s572] sm:$0xff]
  %v574 = vld [vmem:[%s572 + $0x8] sm:$0xff]
  %v575 = vld [vmem:[%s572 + $0x10] sm:$0xff]
  %v576 = vld [vmem:[%s572 + $0x18] sm:$0xff]
  %v577 = vld [vmem:[%s572 + $0x20] sm:$0xff]
  %v578 = vld [vmem:[%s572 + $0x28] sm:$0xff]
  %v579 = vld [vmem:[%s572 + $0x30] sm:$0xff]
  %v580 = vld [vmem:[%s572 + $0x38] sm:$0xff]
  %v581 = vld [vmem:[%s572 + $0x40] sm:$0xff]
  %v582 = vld [vmem:[%s572 + $0x48] sm:$0xff]
  %v583 = vld [vmem:[%s572 + $0x50] sm:$0xff]
  %v584 = vld [vmem:[%s572 + $0x58] sm:$0xff]
  %v585 = vld [vmem:[%s572 + $0x60] sm:$0xff]
  %v586 = vld [vmem:[%s572 + $0x68] sm:$0xff]
  %v587 = vld [vmem:[%s572 + $0x70] sm:$0xff]
  %v588 = vld [vmem:[%s572 + $0x78] sm:$0xff]
  %589 = vmatprep.subr.mxu0 0.0
  %590 = vmatpush1.msra.mxu0 %v573
  %591 = vmatprep.subr.mxu0 0.0
  %592 = vmatpush1.msra.mxu0 %v574
  %593 = vmatprep.subr.mxu0 0.0
  %594 = vmatpush1.msra.mxu0 %v575
  %595 = vmatprep.subr.mxu0 0.0
  %596 = vmatpush1.msra.mxu0 %v576
  %597 = vmatprep.subr.mxu0 0.0
  %598 = vmatpush1.msra.mxu0 %v577
  %599 = vmatprep.subr.mxu0 0.0
  %600 = vmatpush1.msra.mxu0 %v578
  %601 = vmatprep.subr.mxu0 0.0
  %602 = vmatpush1.msra.mxu0 %v579
  %603 = vmatprep.subr.mxu0 0.0
  %604 = vmatpush1.msra.mxu0 %v580
  %605 = vmatprep.subr.mxu0 0.0
  %606 = vmatpush1.msra.mxu0 %v581
  %607 = vmatprep.subr.mxu0 0.0
  %608 = vmatpush1.msra.mxu0 %v582
  %609 = vmatprep.subr.mxu0 0.0
  %610 = vmatpush1.msra.mxu0 %v583
  %611 = vmatprep.subr.mxu0 0.0
  %612 = vmatpush1.msra.mxu0 %v584
  %613 = vmatprep.subr.mxu0 0.0
  %614 = vmatpush1.msra.mxu0 %v585
  %615 = vmatprep.subr.mxu0 0.0
  %616 = vmatpush1.msra.mxu0 %v586
  %617 = vmatprep.subr.mxu0 0.0
  %618 = vmatpush1.msra.mxu0 %v587
  %619 = vmatprep.subr.mxu0 0.0
  %620 = vmatpush1.msra.mxu0 %v588
  %621 = vmatprep.subr.mxu0 0.0
  %622 = vmatpush1.msra.mxu0 0.0
  %623 = vmatprep.subr.mxu0 0.0
  %624 = vmatpush1.msra.mxu0 0.0
  %625 = vmatprep.subr.mxu0 0.0
  %626 = vmatpush1.msra.mxu0 0.0
  %627 = vmatprep.subr.mxu0 0.0
  %628 = vmatpush1.msra.mxu0 0.0
  %629 = vmatprep.subr.mxu0 0.0
  %630 = vmatpush1.msra.mxu0 0.0
  %631 = vmatprep.subr.mxu0 0.0
  %632 = vmatpush1.msra.mxu0 0.0
  %633 = vmatprep.subr.mxu0 0.0
  %634 = vmatpush1.msra.mxu0 0.0
  %635 = vmatprep.subr.mxu0 0.0
  %636 = vmatpush1.msra.mxu0 0.0
  %637 = vmatprep.subr.mxu0 0.0
  %638 = vmatpush1.msra.mxu0 0.0
  %639 = vmatprep.subr.mxu0 0.0
  %640 = vmatpush1.msra.mxu0 0.0
  %641 = vmatprep.subr.mxu0 0.0
  %642 = vmatpush1.msra.mxu0 0.0
  %643 = vmatprep.subr.mxu0 0.0
  %644 = vmatpush1.msra.mxu0 0.0
  %645 = vmatprep.subr.mxu0 0.0
  %646 = vmatpush1.msra.mxu0 0.0
  %647 = vmatprep.subr.mxu0 0.0
  %648 = vmatpush1.msra.mxu0 0.0
  %649 = vmatprep.subr.mxu0 0.0
  %650 = vmatpush1.msra.mxu0 0.0
  %651 = vmatprep.subr.mxu0 0.0
  %652 = vmatpush1.msra.mxu0 0.0
  %653 = vmatprep.mubr.f32.mxu0 0.0
  %654 = vmatmul.mubr.f32.gmra.mrb[0].mxu0 %v137
  %v655 = vpop.f32.mrb[0].mxu0
  %v656 = vadd.f32 0.0, %v655
  %v657 = vpop.f32.mrb[0].mxu0
  %658 = vdwg.mxu0
  %s659 = scalar_lea.vmem %s3, 768
  %v660 = vld [vmem:[%s659] sm:$0xff]
  %v661 = vld [vmem:[%s659 + $0x8] sm:$0xff]
  %v662 = vld [vmem:[%s659 + $0x10] sm:$0xff]
  %v663 = vld [vmem:[%s659 + $0x18] sm:$0xff]
  %v664 = vld [vmem:[%s659 + $0x20] sm:$0xff]
  %v665 = vld [vmem:[%s659 + $0x28] sm:$0xff]
  %v666 = vld [vmem:[%s659 + $0x30] sm:$0xff]
  %v667 = vld [vmem:[%s659 + $0x38] sm:$0xff]
  %v668 = vld [vmem:[%s659 + $0x40] sm:$0xff]
  %v669 = vld [vmem:[%s659 + $0x48] sm:$0xff]
  %v670 = vld [vmem:[%s659 + $0x50] sm:$0xff]
  %v671 = vld [vmem:[%s659 + $0x58] sm:$0xff]
  %v672 = vld [vmem:[%s659 + $0x60] sm:$0xff]
  %v673 = vld [vmem:[%s659 + $0x68] sm:$0xff]
  %v674 = vld [vmem:[%s659 + $0x70] sm:$0xff]
  %v675 = vld [vmem:[%s659 + $0x78] sm:$0xff]
  %676 = vmatprep.subr.mxu0 0.0
  %677 = vmatpush1.msra.mxu0 %v660
  %678 = vmatprep.subr.mxu0 0.0
  %679 = vmatpush1.msra.mxu0 %v661
  %680 = vmatprep.subr.mxu0 0.0
  %681 = vmatpush1.msra.mxu0 %v662
  %682 = vmatprep.subr.mxu0 0.0
  %683 = vmatpush1.msra.mxu0 %v663
  %684 = vmatprep.subr.mxu0 0.0
  %685 = vmatpush1.msra.mxu0 %v664
  %686 = vmatprep.subr.mxu0 0.0
  %687 = vmatpush1.msra.mxu0 %v665
  %688 = vmatprep.subr.mxu0 0.0
  %689 = vmatpush1.msra.mxu0 %v666
  %690 = vmatprep.subr.mxu0 0.0
  %691 = vmatpush1.msra.mxu0 %v667
  %692 = vmatprep.subr.mxu0 0.0
  %693 = vmatpush1.msra.mxu0 %v668
  %694 = vmatprep.subr.mxu0 0.0
  %695 = vmatpush1.msra.mxu0 %v669
  %696 = vmatprep.subr.mxu0 0.0
  %697 = vmatpush1.msra.mxu0 %v670
  %698 = vmatprep.subr.mxu0 0.0
  %699 = vmatpush1.msra.mxu0 %v671
  %700 = vmatprep.subr.mxu0 0.0
  %701 = vmatpush1.msra.mxu0 %v672
  %702 = vmatprep.subr.mxu0 0.0
  %703 = vmatpush1.msra.mxu0 %v673
  %704 = vmatprep.subr.mxu0 0.0
  %705 = vmatpush1.msra.mxu0 %v674
  %706 = vmatprep.subr.mxu0 0.0
  %707 = vmatpush1.msra.mxu0 %v675
  %708 = vmatprep.subr.mxu0 0.0
  %709 = vmatpush1.msra.mxu0 0.0
  %710 = vmatprep.subr.mxu0 0.0
  %711 = vmatpush1.msra.mxu0 0.0
  %712 = vmatprep.subr.mxu0 0.0
  %713 = vmatpush1.msra.mxu0 0.0
  %714 = vmatprep.subr.mxu0 0.0
  %715 = vmatpush1.msra.mxu0 0.0
  %716 = vmatprep.subr.mxu0 0.0
  %717 = vmatpush1.msra.mxu0 0.0
  %718 = vmatprep.subr.mxu0 0.0
  %719 = vmatpush1.msra.mxu0 0.0
  %720 = vmatprep.subr.mxu0 0.0
  %721 = vmatpush1.msra.mxu0 0.0
  %722 = vmatprep.subr.mxu0 0.0
  %723 = vmatpush1.msra.mxu0 0.0
  %724 = vmatprep.subr.mxu0 0.0
  %725 = vmatpush1.msra.mxu0 0.0
  %726 = vmatprep.subr.mxu0 0.0
  %727 = vmatpush1.msra.mxu0 0.0
  %728 = vmatprep.subr.mxu0 0.0
  %729 = vmatpush1.msra.mxu0 0.0
  %730 = vmatprep.subr.mxu0 0.0
  %731 = vmatpush1.msra.mxu0 0.0
  %732 = vmatprep.subr.mxu0 0.0
  %733 = vmatpush1.msra.mxu0 0.0
  %734 = vmatprep.subr.mxu0 0.0
  %735 = vmatpush1.msra.mxu0 0.0
  %736 = vmatprep.subr.mxu0 0.0
  %737 = vmatpush1.msra.mxu0 0.0
  %738 = vmatprep.subr.mxu0 0.0
  %739 = vmatpush1.msra.mxu0 0.0
  %740 = vmatprep.mubr.f32.mxu0 0.0
  %741 = vmatmul.mubr.f32.gmra.mrb[0].mxu0 %v137
  %v742 = vpop.f32.mrb[0].mxu0
  %v743 = vadd.f32 0.0, %v742
  %v744 = vpop.f32.mrb[0].mxu0
  %745 = vdwg.mxu0
  %s746 = scalar_lea.vmem %s3, 896
  %v747 = vld [vmem:[%s746] sm:$0xff]
  %v748 = vld [vmem:[%s746 + $0x8] sm:$0xff]
  %v749 = vld [vmem:[%s746 + $0x10] sm:$0xff]
  %v750 = vld [vmem:[%s746 + $0x18] sm:$0xff]
  %v751 = vld [vmem:[%s746 + $0x20] sm:$0xff]
  %v752 = vld [vmem:[%s746 + $0x28] sm:$0xff]
  %v753 = vld [vmem:[%s746 + $0x30] sm:$0xff]
  %v754 = vld [vmem:[%s746 + $0x38] sm:$0xff]
  %v755 = vld [vmem:[%s746 + $0x40] sm:$0xff]
  %v756 = vld [vmem:[%s746 + $0x48] sm:$0xff]
  %v757 = vld [vmem:[%s746 + $0x50] sm:$0xff]
  %v758 = vld [vmem:[%s746 + $0x58] sm:$0xff]
  %v759 = vld [vmem:[%s746 + $0x60] sm:$0xff]
  %v760 = vld [vmem:[%s746 + $0x68] sm:$0xff]
  %v761 = vld [vmem:[%s746 + $0x70] sm:$0xff]
  %v762 = vld [vmem:[%s746 + $0x78] sm:$0xff]
  %763 = vmatprep.subr.mxu0 0.0
  %764 = vmatpush1.msra.mxu0 %v747
  %765 = vmatprep.subr.mxu0 0.0
  %766 = vmatpush1.msra.mxu0 %v748
  %767 = vmatprep.subr.mxu0 0.0
  %768 = vmatpush1.msra.mxu0 %v749
  %769 = vmatprep.subr.mxu0 0.0
  %770 = vmatpush1.msra.mxu0 %v750
  %771 = vmatprep.subr.mxu0 0.0
  %772 = vmatpush1.msra.mxu0 %v751
  %773 = vmatprep.subr.mxu0 0.0
  %774 = vmatpush1.msra.mxu0 %v752
  %775 = vmatprep.subr.mxu0 0.0
  %776 = vmatpush1.msra.mxu0 %v753
  %777 = vmatprep.subr.mxu0 0.0
  %778 = vmatpush1.msra.mxu0 %v754
  %779 = vmatprep.subr.mxu0 0.0
  %780 = vmatpush1.msra.mxu0 %v755
  %781 = vmatprep.subr.mxu0 0.0
  %782 = vmatpush1.msra.mxu0 %v756
  %783 = vmatprep.subr.mxu0 0.0
  %784 = vmatpush1.msra.mxu0 %v757
  %785 = vmatprep.subr.mxu0 0.0
  %786 = vmatpush1.msra.mxu0 %v758
  %787 = vmatprep.subr.mxu0 0.0
  %788 = vmatpush1.msra.mxu0 %v759
  %789 = vmatprep.subr.mxu0 0.0
  %790 = vmatpush1.msra.mxu0 %v760
  %791 = vmatprep.subr.mxu0 0.0
  %792 = vmatpush1.msra.mxu0 %v761
  %793 = vmatprep.subr.mxu0 0.0
  %794 = vmatpush1.msra.mxu0 %v762
  %795 = vmatprep.subr.mxu0 0.0
  %796 = vmatpush1.msra.mxu0 0.0
  %797 = vmatprep.subr.mxu0 0.0
  %798 = vmatpush1.msra.mxu0 0.0
  %799 = vmatprep.subr.mxu0 0.0
  %800 = vmatpush1.msra.mxu0 0.0
  %801 = vmatprep.subr.mxu0 0.0
  %802 = vmatpush1.msra.mxu0 0.0
  %803 = vmatprep.subr.mxu0 0.0
  %804 = vmatpush1.msra.mxu0 0.0
  %805 = vmatprep.subr.mxu0 0.0
  %806 = vmatpush1.msra.mxu0 0.0
  %807 = vmatprep.subr.mxu0 0.0
  %808 = vmatpush1.msra.mxu0 0.0
  %809 = vmatprep.subr.mxu0 0.0
  %810 = vmatpush1.msra.mxu0 0.0
  %811 = vmatprep.subr.mxu0 0.0
  %812 = vmatpush1.msra.mxu0 0.0
  %813 = vmatprep.subr.mxu0 0.0
  %814 = vmatpush1.msra.mxu0 0.0
  %815 = vmatprep.subr.mxu0 0.0
  %816 = vmatpush1.msra.mxu0 0.0
  %817 = vmatprep.subr.mxu0 0.0
  %818 = vmatpush1.msra.mxu0 0.0
  %819 = vmatprep.subr.mxu0 0.0
  %820 = vmatpush1.msra.mxu0 0.0
  %821 = vmatprep.subr.mxu0 0.0
  %822 = vmatpush1.msra.mxu0 0.0
  %823 = vmatprep.subr.mxu0 0.0
  %824 = vmatpush1.msra.mxu0 0.0
  %825 = vmatprep.subr.mxu0 0.0
  %826 = vmatpush1.msra.mxu0 0.0
  %827 = vmatprep.mubr.f32.mxu0 0.0
  %828 = vmatmul.mubr.f32.gmra.mrb[0].mxu0 %v137
  %v829 = vpop.f32.mrb[0].mxu0
  %v830 = vadd.f32 0.0, %v829
  %v831 = vpop.f32.mrb[0].mxu0
  %832 = vdwg.mxu0
  %s833 = scalar_lea.vmem %s3, 1024
  %v834 = vld [vmem:[%s833] sm:$0xff]
  %v835 = vld [vmem:[%s833 + $0x8] sm:$0xff]
  %v836 = vld [vmem:[%s833 + $0x10] sm:$0xff]
  %v837 = vld [vmem:[%s833 + $0x18] sm:$0xff]
  %v838 = vld [vmem:[%s833 + $0x20] sm:$0xff]
  %v839 = vld [vmem:[%s833 + $0x28] sm:$0xff]
  %v840 = vld [vmem:[%s833 + $0x30] sm:$0xff]
  %v841 = vld [vmem:[%s833 + $0x38] sm:$0xff]
  %v842 = vld [vmem:[%s833 + $0x40] sm:$0xff]
  %v843 = vld [vmem:[%s833 + $0x48] sm:$0xff]
  %v844 = vld [vmem:[%s833 + $0x50] sm:$0xff]
  %v845 = vld [vmem:[%s833 + $0x58] sm:$0xff]
  %v846 = vld [vmem:[%s833 + $0x60] sm:$0xff]
  %v847 = vld [vmem:[%s833 + $0x68] sm:$0xff]
  %v848 = vld [vmem:[%s833 + $0x70] sm:$0xff]
  %v849 = vld [vmem:[%s833 + $0x78] sm:$0xff]
  %850 = vmatprep.subr.mxu0 0.0
  %851 = vmatpush1.msra.mxu0 %v834
  %852 = vmatprep.subr.mxu0 0.0
  %853 = vmatpush1.msra.mxu0 %v835
  %854 = vmatprep.subr.mxu0 0.0
  %855 = vmatpush1.msra.mxu0 %v836
  %856 = vmatprep.subr.mxu0 0.0
  %857 = vmatpush1.msra.mxu0 %v837
  %858 = vmatprep.subr.mxu0 0.0
  %859 = vmatpush1.msra.mxu0 %v838
  %860 = vmatprep.subr.mxu0 0.0
  %861 = vmatpush1.msra.mxu0 %v839
  %862 = vmatprep.subr.mxu0 0.0
  %863 = vmatpush1.msra.mxu0 %v840
  %864 = vmatprep.subr.mxu0 0.0
  %865 = vmatpush1.msra.mxu0 %v841
  %866 = vmatprep.subr.mxu0 0.0
  %867 = vmatpush1.msra.mxu0 %v842
  %868 = vmatprep.subr.mxu0 0.0
  %869 = vmatpush1.msra.mxu0 %v843
  %870 = vmatprep.subr.mxu0 0.0
  %871 = vmatpush1.msra.mxu0 %v844
  %872 = vmatprep.subr.mxu0 0.0
  %873 = vmatpush1.msra.mxu0 %v845
  %874 = vmatprep.subr.mxu0 0.0
  %875 = vmatpush1.msra.mxu0 %v846
  %876 = vmatprep.subr.mxu0 0.0
  %877 = vmatpush1.msra.mxu0 %v847
  %878 = vmatprep.subr.mxu0 0.0
  %879 = vmatpush1.msra.mxu0 %v848
  %880 = vmatprep.subr.mxu0 0.0
  %881 = vmatpush1.msra.mxu0 %v849
  %882 = vmatprep.subr.mxu0 0.0
  %883 = vmatpush1.msra.mxu0 0.0
  %884 = vmatprep.subr.mxu0 0.0
  %885 = vmatpush1.msra.mxu0 0.0
  %886 = vmatprep.subr.mxu0 0.0
  %887 = vmatpush1.msra.mxu0 0.0
  %888 = vmatprep.subr.mxu0 0.0
  %889 = vmatpush1.msra.mxu0 0.0
  %890 = vmatprep.subr.mxu0 0.0
  %891 = vmatpush1.msra.mxu0 0.0
  %892 = vmatprep.subr.mxu0 0.0
  %893 = vmatpush1.msra.mxu0 0.0
  %894 = vmatprep.subr.mxu0 0.0
  %895 = vmatpush1.msra.mxu0 0.0
  %896 = vmatprep.subr.mxu0 0.0
  %897 = vmatpush1.msra.mxu0 0.0
  %898 = vmatprep.subr.mxu0 0.0
  %899 = vmatpush1.msra.mxu0 0.0
  %900 = vmatprep.subr.mxu0 0.0
  %901 = vmatpush1.msra.mxu0 0.0
  %902 = vmatprep.subr.mxu0 0.0
  %903 = vmatpush1.msra.mxu0 0.0
  %904 = vmatprep.subr.mxu0 0.0
  %905 = vmatpush1.msra.mxu0 0.0
  %906 = vmatprep.subr.mxu0 0.0
  %907 = vmatpush1.msra.mxu0 0.0
  %908 = vmatprep.subr.mxu0 0.0
  %909 = vmatpush1.msra.mxu0 0.0
  %910 = vmatprep.subr.mxu0 0.0
  %911 = vmatpush1.msra.mxu0 0.0
  %912 = vmatprep.subr.mxu0 0.0
  %913 = vmatpush1.msra.mxu0 0.0
  %914 = vmatprep.mubr.f32.mxu0 0.0
  %915 = vmatmul.mubr.f32.gmra.mrb[0].mxu0 %v137
  %v916 = vpop.f32.mrb[0].mxu0
  %v917 = vadd.f32 0.0, %v916
  %v918 = vpop.f32.mrb[0].mxu0
  %919 = vdwg.mxu0
  %s920 = scalar_lea.vmem %s3, 1152
  %v921 = vld [vmem:[%s920] sm:$0xff]
  %v922 = vld [vmem:[%s920 + $0x8] sm:$0xff]
  %v923 = vld [vmem:[%s920 + $0x10] sm:$0xff]
  %v924 = vld [vmem:[%s920 + $0x18] sm:$0xff]
  %v925 = vld [vmem:[%s920 + $0x20] sm:$0xff]
  %v926 = vld [vmem:[%s920 + $0x28] sm:$0xff]
  %v927 = vld [vmem:[%s920 + $0x30] sm:$0xff]
  %v928 = vld [vmem:[%s920 + $0x38] sm:$0xff]
  %v929 = vld [vmem:[%s920 + $0x40] sm:$0xff]
  %v930 = vld [vmem:[%s920 + $0x48] sm:$0xff]
  %v931 = vld [vmem:[%s920 + $0x50] sm:$0xff]
  %v932 = vld [vmem:[%s920 + $0x58] sm:$0xff]
  %v933 = vld [vmem:[%s920 + $0x60] sm:$0xff]
  %v934 = vld [vmem:[%s920 + $0x68] sm:$0xff]
  %v935 = vld [vmem:[%s920 + $0x70] sm:$0xff]
  %v936 = vld [vmem:[%s920 + $0x78] sm:$0xff]
  %937 = vmatprep.subr.mxu0 0.0
  %938 = vmatpush1.msra.mxu0 %v921
  %939 = vmatprep.subr.mxu0 0.0
  %940 = vmatpush1.msra.mxu0 %v922
  %941 = vmatprep.subr.mxu0 0.0
  %942 = vmatpush1.msra.mxu0 %v923
  %943 = vmatprep.subr.mxu0 0.0
  %944 = vmatpush1.msra.mxu0 %v924
  %945 = vmatprep.subr.mxu0 0.0
  %946 = vmatpush1.msra.mxu0 %v925
  %947 = vmatprep.subr.mxu0 0.0
  %948 = vmatpush1.msra.mxu0 %v926
  %949 = vmatprep.subr.mxu0 0.0
  %950 = vmatpush1.msra.mxu0 %v927
  %951 = vmatprep.subr.mxu0 0.0
  %952 = vmatpush1.msra.mxu0 %v928
  %953 = vmatprep.subr.mxu0 0.0
  %954 = vmatpush1.msra.mxu0 %v929
  %955 = vmatprep.subr.mxu0 0.0
  %956 = vmatpush1.msra.mxu0 %v930
  %957 = vmatprep.subr.mxu0 0.0
  %958 = vmatpush1.msra.mxu0 %v931
  %959 = vmatprep.subr.mxu0 0.0
  %960 = vmatpush1.msra.mxu0 %v932
  %961 = vmatprep.subr.mxu0 0.0
  %962 = vmatpush1.msra.mxu0 %v933
  %963 = vmatprep.subr.mxu0 0.0
  %964 = vmatpush1.msra.mxu0 %v934
  %965 = vmatprep.subr.mxu0 0.0
  %966 = vmatpush1.msra.mxu0 %v935
  %967 = vmatprep.subr.mxu0 0.0
  %968 = vmatpush1.msra.mxu0 %v936
  %969 = vmatprep.subr.mxu0 0.0
  %970 = vmatpush1.msra.mxu0 0.0
  %971 = vmatprep.subr.mxu0 0.0
  %972 = vmatpush1.msra.mxu0 0.0
  %973 = vmatprep.subr.mxu0 0.0
  %974 = vmatpush1.msra.mxu0 0.0
  %975 = vmatprep.subr.mxu0 0.0
  %976 = vmatpush1.msra.mxu0 0.0
  %977 = vmatprep.subr.mxu0 0.0
  %978 = vmatpush1.msra.mxu0 0.0
  %979 = vmatprep.subr.mxu0 0.0
  %980 = vmatpush1.msra.mxu0 0.0
  %981 = vmatprep.subr.mxu0 0.0
  %982 = vmatpush1.msra.mxu0 0.0
  %983 = vmatprep.subr.mxu0 0.0
  %984 = vmatpush1.msra.mxu0 0.0
  %985 = vmatprep.subr.mxu0 0.0
  %986 = vmatpush1.msra.mxu0 0.0
  %987 = vmatprep.subr.mxu0 0.0
  %988 = vmatpush1.msra.mxu0 0.0
  %989 = vmatprep.subr.mxu0 0.0
  %990 = vmatpush1.msra.mxu0 0.0
  %991 = vmatprep.subr.mxu0 0.0
  %992 = vmatpush1.msra.mxu0 0.0
  %993 = vmatprep.subr.mxu0 0.0
  %994 = vmatpush1.msra.mxu0 0.0
  %995 = vmatprep.subr.mxu0 0.0
  %996 = vmatpush1.msra.mxu0 0.0
  %997 = vmatprep.subr.mxu0 0.0
  %998 = vmatpush1.msra.mxu0 0.0
  %999 = vmatprep.subr.mxu0 0.0
  %1000 = vmatpush1.msra.mxu0 0.0
  %1001 = vmatprep.mubr.f32.mxu0 0.0
  %1002 = vmatmul.mubr.f32.gmra.mrb[0].mxu0 %v137
  %v1003 = vpop.f32.mrb[0].mxu0
  %v1004 = vadd.f32 0.0, %v1003
  %v1005 = vpop.f32.mrb[0].mxu0
  %1006 = vdwg.mxu0
  %s1007 = scalar_lea.vmem %s3, 1280
  %v1008 = vld [vmem:[%s1007] sm:$0xff]
  %v1009 = vld [vmem:[%s1007 + $0x8] sm:$0xff]
  %v1010 = vld [vmem:[%s1007 + $0x10] sm:$0xff]
  %v1011 = vld [vmem:[%s1007 + $0x18] sm:$0xff]
  %v1012 = vld [vmem:[%s1007 + $0x20] sm:$0xff]
  %v1013 = vld [vmem:[%s1007 + $0x28] sm:$0xff]
  %v1014 = vld [vmem:[%s1007 + $0x30] sm:$0xff]
  %v1015 = vld [vmem:[%s1007 + $0x38] sm:$0xff]
  %v1016 = vld [vmem:[%s1007 + $0x40] sm:$0xff]
  %v1017 = vld [vmem:[%s1007 + $0x48] sm:$0xff]
  %v1018 = vld [vmem:[%s1007 + $0x50] sm:$0xff]
  %v1019 = vld [vmem:[%s1007 + $0x58] sm:$0xff]
  %v1020 = vld [vmem:[%s1007 + $0x60] sm:$0xff]
  %v1021 = vld [vmem:[%s1007 + $0x68] sm:$0xff]
  %v1022 = vld [vmem:[%s1007 + $0x70] sm:$0xff]
  %v1023 = vld [vmem:[%s1007 + $0x78] sm:$0xff]
  %1024 = vmatprep.subr.mxu0 0.0
  %1025 = vmatpush1.msra.mxu0 %v1008
  %1026 = vmatprep.subr.mxu0 0.0
  %1027 = vmatpush1.msra.mxu0 %v1009
  %1028 = vmatprep.subr.mxu0 0.0
  %1029 = vmatpush1.msra.mxu0 %v1010
  %1030 = vmatprep.subr.mxu0 0.0
  %1031 = vmatpush1.msra.mxu0 %v1011
  %1032 = vmatprep.subr.mxu0 0.0
  %1033 = vmatpush1.msra.mxu0 %v1012
  %1034 = vmatprep.subr.mxu0 0.0
  %1035 = vmatpush1.msra.mxu0 %v1013
  %1036 = vmatprep.subr.mxu0 0.0
  %1037 = vmatpush1.msra.mxu0 %v1014
  %1038 = vmatprep.subr.mxu0 0.0
  %1039 = vmatpush1.msra.mxu0 %v1015
  %1040 = vmatprep.subr.mxu0 0.0
  %1041 = vmatpush1.msra.mxu0 %v1016
  %1042 = vmatprep.subr.mxu0 0.0
  %1043 = vmatpush1.msra.mxu0 %v1017
  %1044 = vmatprep.subr.mxu0 0.0
  %1045 = vmatpush1.msra.mxu0 %v1018
  %1046 = vmatprep.subr.mxu0 0.0
  %1047 = vmatpush1.msra.mxu0 %v1019
  %1048 = vmatprep.subr.mxu0 0.0
  %1049 = vmatpush1.msra.mxu0 %v1020
  %1050 = vmatprep.subr.mxu0 0.0
  %1051 = vmatpush1.msra.mxu0 %v1021
  %1052 = vmatprep.subr.mxu0 0.0
  %1053 = vmatpush1.msra.mxu0 %v1022
  %1054 = vmatprep.subr.mxu0 0.0
  %1055 = vmatpush1.msra.mxu0 %v1023
  %1056 = vmatprep.subr.mxu0 0.0
  %1057 = vmatpush1.msra.mxu0 0.0
  %1058 = vmatprep.subr.mxu0 0.0
  %1059 = vmatpush1.msra.mxu0 0.0
  %1060 = vmatprep.subr.mxu0 0.0
  %1061 = vmatpush1.msra.mxu0 0.0
  %1062 = vmatprep.subr.mxu0 0.0
  %1063 = vmatpush1.msra.mxu0 0.0
  %1064 = vmatprep.subr.mxu0 0.0
  %1065 = vmatpush1.msra.mxu0 0.0
  %1066 = vmatprep.subr.mxu0 0.0
  %1067 = vmatpush1.msra.mxu0 0.0
  %1068 = vmatprep.subr.mxu0 0.0
  %1069 = vmatpush1.msra.mxu0 0.0
  %1070 = vmatprep.subr.mxu0 0.0
  %1071 = vmatpush1.msra.mxu0 0.0
  %1072 = vmatprep.subr.mxu0 0.0
  %1073 = vmatpush1.msra.mxu0 0.0
  %1074 = vmatprep.subr.mxu0 0.0
  %1075 = vmatpush1.msra.mxu0 0.0
  %1076 = vmatprep.subr.mxu0 0.0
  %1077 = vmatpush1.msra.mxu0 0.0
  %1078 = vmatprep.subr.mxu0 0.0
  %1079 = vmatpush1.msra.mxu0 0.0
  %1080 = vmatprep.subr.mxu0 0.0
  %1081 = vmatpush1.msra.mxu0 0.0
  %1082 = vmatprep.subr.mxu0 0.0
  %1083 = vmatpush1.msra.mxu0 0.0
  %1084 = vmatprep.subr.mxu0 0.0
  %1085 = vmatpush1.msra.mxu0 0.0
  %1086 = vmatprep.subr.mxu0 0.0
  %1087 = vmatpush1.msra.mxu0 0.0
  %1088 = vmatprep.mubr.f32.mxu0 0.0
  %1089 = vmatmul.mubr.f32.gmra.mrb[0].mxu0 %v137
  %v1090 = vpop.f32.mrb[0].mxu0
  %v1091 = vadd.f32 0.0, %v1090
  %v1092 = vpop.f32.mrb[0].mxu0
  %1093 = vdwg.mxu0
  %s1094 = scalar_lea.vmem %s3, 1408
  %v1095 = vld [vmem:[%s1094] sm:$0xff]
  %v1096 = vld [vmem:[%s1094 + $0x8] sm:$0xff]
  %v1097 = vld [vmem:[%s1094 + $0x10] sm:$0xff]
  %v1098 = vld [vmem:[%s1094 + $0x18] sm:$0xff]
  %v1099 = vld [vmem:[%s1094 + $0x20] sm:$0xff]
  %v1100 = vld [vmem:[%s1094 + $0x28] sm:$0xff]
  %v1101 = vld [vmem:[%s1094 + $0x30] sm:$0xff]
  %v1102 = vld [vmem:[%s1094 + $0x38] sm:$0xff]
  %v1103 = vld [vmem:[%s1094 + $0x40] sm:$0xff]
  %v1104 = vld [vmem:[%s1094 + $0x48] sm:$0xff]
  %v1105 = vld [vmem:[%s1094 + $0x50] sm:$0xff]
  %v1106 = vld [vmem:[%s1094 + $0x58] sm:$0xff]
  %v1107 = vld [vmem:[%s1094 + $0x60] sm:$0xff]
  %v1108 = vld [vmem:[%s1094 + $0x68] sm:$0xff]
  %v1109 = vld [vmem:[%s1094 + $0x70] sm:$0xff]
  %v1110 = vld [vmem:[%s1094 + $0x78] sm:$0xff]
  %1111 = vmatprep.subr.mxu0 0.0
  %1112 = vmatpush1.msra.mxu0 %v1095
  %1113 = vmatprep.subr.mxu0 0.0
  %1114 = vmatpush1.msra.mxu0 %v1096
  %1115 = vmatprep.subr.mxu0 0.0
  %1116 = vmatpush1.msra.mxu0 %v1097
  %1117 = vmatprep.subr.mxu0 0.0
  %1118 = vmatpush1.msra.mxu0 %v1098
  %1119 = vmatprep.subr.mxu0 0.0
  %1120 = vmatpush1.msra.mxu0 %v1099
  %1121 = vmatprep.subr.mxu0 0.0
  %1122 = vmatpush1.msra.mxu0 %v1100
  %1123 = vmatprep.subr.mxu0 0.0
  %1124 = vmatpush1.msra.mxu0 %v1101
  %1125 = vmatprep.subr.mxu0 0.0
  %1126 = vmatpush1.msra.mxu0 %v1102
  %1127 = vmatprep.subr.mxu0 0.0
  %1128 = vmatpush1.msra.mxu0 %v1103
  %1129 = vmatprep.subr.mxu0 0.0
  %1130 = vmatpush1.msra.mxu0 %v1104
  %1131 = vmatprep.subr.mxu0 0.0
  %1132 = vmatpush1.msra.mxu0 %v1105
  %1133 = vmatprep.subr.mxu0 0.0
  %1134 = vmatpush1.msra.mxu0 %v1106
  %1135 = vmatprep.subr.mxu0 0.0
  %1136 = vmatpush1.msra.mxu0 %v1107
  %1137 = vmatprep.subr.mxu0 0.0
  %1138 = vmatpush1.msra.mxu0 %v1108
  %1139 = vmatprep.subr.mxu0 0.0
  %1140 = vmatpush1.msra.mxu0 %v1109
  %1141 = vmatprep.subr.mxu0 0.0
  %1142 = vmatpush1.msra.mxu0 %v1110
  %1143 = vmatprep.subr.mxu0 0.0
  %1144 = vmatpush1.msra.mxu0 0.0
  %1145 = vmatprep.subr.mxu0 0.0
  %1146 = vmatpush1.msra.mxu0 0.0
  %1147 = vmatprep.subr.mxu0 0.0
  %1148 = vmatpush1.msra.mxu0 0.0
  %1149 = vmatprep.subr.mxu0 0.0
  %1150 = vmatpush1.msra.mxu0 0.0
  %1151 = vmatprep.subr.mxu0 0.0
  %1152 = vmatpush1.msra.mxu0 0.0
  %1153 = vmatprep.subr.mxu0 0.0
  %1154 = vmatpush1.msra.mxu0 0.0
  %1155 = vmatprep.subr.mxu0 0.0
  %1156 = vmatpush1.msra.mxu0 0.0
  %1157 = vmatprep.subr.mxu0 0.0
  %1158 = vmatpush1.msra.mxu0 0.0
  %1159 = vmatprep.subr.mxu0 0.0
  %1160 = vmatpush1.msra.mxu0 0.0
  %1161 = vmatprep.subr.mxu0 0.0
  %1162 = vmatpush1.msra.mxu0 0.0
  %1163 = vmatprep.subr.mxu0 0.0
  %1164 = vmatpush1.msra.mxu0 0.0
  %1165 = vmatprep.subr.mxu0 0.0
  %1166 = vmatpush1.msra.mxu0 0.0
  %1167 = vmatprep.subr.mxu0 0.0
  %1168 = vmatpush1.msra.mxu0 0.0
  %1169 = vmatprep.subr.mxu0 0.0
  %1170 = vmatpush1.msra.mxu0 0.0
  %1171 = vmatprep.subr.mxu0 0.0
  %1172 = vmatpush1.msra.mxu0 0.0
  %1173 = vmatprep.subr.mxu0 0.0
  %1174 = vmatpush1.msra.mxu0 0.0
  %1175 = vmatprep.mubr.f32.mxu0 0.0
  %1176 = vmatmul.mubr.f32.gmra.mrb[0].mxu0 %v137
  %v1177 = vpop.f32.mrb[0].mxu0
  %v1178 = vadd.f32 0.0, %v1177
  %v1179 = vpop.f32.mrb[0].mxu0
  %1180 = vdwg.mxu0
  %s1181 = scalar_lea.vmem %s3, 1536
  %v1182 = vld [vmem:[%s1181] sm:$0xff]
  %v1183 = vld [vmem:[%s1181 + $0x8] sm:$0xff]
  %v1184 = vld [vmem:[%s1181 + $0x10] sm:$0xff]
  %v1185 = vld [vmem:[%s1181 + $0x18] sm:$0xff]
  %v1186 = vld [vmem:[%s1181 + $0x20] sm:$0xff]
  %v1187 = vld [vmem:[%s1181 + $0x28] sm:$0xff]
  %v1188 = vld [vmem:[%s1181 + $0x30] sm:$0xff]
  %v1189 = vld [vmem:[%s1181 + $0x38] sm:$0xff]
  %v1190 = vld [vmem:[%s1181 + $0x40] sm:$0xff]
  %v1191 = vld [vmem:[%s1181 + $0x48] sm:$0xff]
  %v1192 = vld [vmem:[%s1181 + $0x50] sm:$0xff]
  %v1193 = vld [vmem:[%s1181 + $0x58] sm:$0xff]
  %v1194 = vld [vmem:[%s1181 + $0x60] sm:$0xff]
  %v1195 = vld [vmem:[%s1181 + $0x68] sm:$0xff]
  %v1196 = vld [vmem:[%s1181 + $0x70] sm:$0xff]
  %v1197 = vld [vmem:[%s1181 + $0x78] sm:$0xff]
  %1198 = vmatprep.subr.mxu0 0.0
  %1199 = vmatpush1.msra.mxu0 %v1182
  %1200 = vmatprep.subr.mxu0 0.0
  %1201 = vmatpush1.msra.mxu0 %v1183
  %1202 = vmatprep.subr.mxu0 0.0
  %1203 = vmatpush1.msra.mxu0 %v1184
  %1204 = vmatprep.subr.mxu0 0.0
  %1205 = vmatpush1.msra.mxu0 %v1185
  %1206 = vmatprep.subr.mxu0 0.0
  %1207 = vmatpush1.msra.mxu0 %v1186
  %1208 = vmatprep.subr.mxu0 0.0
  %1209 = vmatpush1.msra.mxu0 %v1187
  %1210 = vmatprep.subr.mxu0 0.0
  %1211 = vmatpush1.msra.mxu0 %v1188
  %1212 = vmatprep.subr.mxu0 0.0
  %1213 = vmatpush1.msra.mxu0 %v1189
  %1214 = vmatprep.subr.mxu0 0.0
  %1215 = vmatpush1.msra.mxu0 %v1190
  %1216 = vmatprep.subr.mxu0 0.0
  %1217 = vmatpush1.msra.mxu0 %v1191
  %1218 = vmatprep.subr.mxu0 0.0
  %1219 = vmatpush1.msra.mxu0 %v1192
  %1220 = vmatprep.subr.mxu0 0.0
  %1221 = vmatpush1.msra.mxu0 %v1193
  %1222 = vmatprep.subr.mxu0 0.0
  %1223 = vmatpush1.msra.mxu0 %v1194
  %1224 = vmatprep.subr.mxu0 0.0
  %1225 = vmatpush1.msra.mxu0 %v1195
  %1226 = vmatprep.subr.mxu0 0.0
  %1227 = vmatpush1.msra.mxu0 %v1196
  %1228 = vmatprep.subr.mxu0 0.0
  %1229 = vmatpush1.msra.mxu0 %v1197
  %1230 = vmatprep.subr.mxu0 0.0
  %1231 = vmatpush1.msra.mxu0 0.0
  %1232 = vmatprep.subr.mxu0 0.0
  %1233 = vmatpush1.msra.mxu0 0.0
  %1234 = vmatprep.subr.mxu0 0.0
  %1235 = vmatpush1.msra.mxu0 0.0
  %1236 = vmatprep.subr.mxu0 0.0
  %1237 = vmatpush1.msra.mxu0 0.0
  %1238 = vmatprep.subr.mxu0 0.0
  %1239 = vmatpush1.msra.mxu0 0.0
  %1240 = vmatprep.subr.mxu0 0.0
  %1241 = vmatpush1.msra.mxu0 0.0
  %1242 = vmatprep.subr.mxu0 0.0
  %1243 = vmatpush1.msra.mxu0 0.0
  %1244 = vmatprep.subr.mxu0 0.0
  %1245 = vmatpush1.msra.mxu0 0.0
  %1246 = vmatprep.subr.mxu0 0.0
  %1247 = vmatpush1.msra.mxu0 0.0
  %1248 = vmatprep.subr.mxu0 0.0
  %1249 = vmatpush1.msra.mxu0 0.0
  %1250 = vmatprep.subr.mxu0 0.0
  %1251 = vmatpush1.msra.mxu0 0.0
  %1252 = vmatprep.subr.mxu0 0.0
  %1253 = vmatpush1.msra.mxu0 0.0
  %1254 = vmatprep.subr.mxu0 0.0
  %1255 = vmatpush1.msra.mxu0 0.0
  %1256 = vmatprep.subr.mxu0 0.0
  %1257 = vmatpush1.msra.mxu0 0.0
  %1258 = vmatprep.subr.mxu0 0.0
  %1259 = vmatpush1.msra.mxu0 0.0
  %1260 = vmatprep.subr.mxu0 0.0
  %1261 = vmatpush1.msra.mxu0 0.0
  %1262 = vmatprep.mubr.f32.mxu0 0.0
  %1263 = vmatmul.mubr.f32.gmra.mrb[0].mxu0 %v137
  %v1264 = vpop.f32.mrb[0].mxu0
  %v1265 = vadd.f32 0.0, %v1264
  %v1266 = vpop.f32.mrb[0].mxu0
  %1267 = vdwg.mxu0
  %s1268 = scalar_lea.vmem %s3, 1664
  %v1269 = vld [vmem:[%s1268] sm:$0xff]
  %v1270 = vld [vmem:[%s1268 + $0x8] sm:$0xff]
  %v1271 = vld [vmem:[%s1268 + $0x10] sm:$0xff]
  %v1272 = vld [vmem:[%s1268 + $0x18] sm:$0xff]
  %v1273 = vld [vmem:[%s1268 + $0x20] sm:$0xff]
  %v1274 = vld [vmem:[%s1268 + $0x28] sm:$0xff]
  %v1275 = vld [vmem:[%s1268 + $0x30] sm:$0xff]
  %v1276 = vld [vmem:[%s1268 + $0x38] sm:$0xff]
  %v1277 = vld [vmem:[%s1268 + $0x40] sm:$0xff]
  %v1278 = vld [vmem:[%s1268 + $0x48] sm:$0xff]
  %v1279 = vld [vmem:[%s1268 + $0x50] sm:$0xff]
  %v1280 = vld [vmem:[%s1268 + $0x58] sm:$0xff]
  %v1281 = vld [vmem:[%s1268 + $0x60] sm:$0xff]
  %v1282 = vld [vmem:[%s1268 + $0x68] sm:$0xff]
  %v1283 = vld [vmem:[%s1268 + $0x70] sm:$0xff]
  %v1284 = vld [vmem:[%s1268 + $0x78] sm:$0xff]
  %1285 = vmatprep.subr.mxu0 0.0
  %1286 = vmatpush1.msra.mxu0 %v1269
  %1287 = vmatprep.subr.mxu0 0.0
  %1288 = vmatpush1.msra.mxu0 %v1270
  %1289 = vmatprep.subr.mxu0 0.0
  %1290 = vmatpush1.msra.mxu0 %v1271
  %1291 = vmatprep.subr.mxu0 0.0
  %1292 = vmatpush1.msra.mxu0 %v1272
  %1293 = vmatprep.subr.mxu0 0.0
  %1294 = vmatpush1.msra.mxu0 %v1273
  %1295 = vmatprep.subr.mxu0 0.0
  %1296 = vmatpush1.msra.mxu0 %v1274
  %1297 = vmatprep.subr.mxu0 0.0
  %1298 = vmatpush1.msra.mxu0 %v1275
  %1299 = vmatprep.subr.mxu0 0.0
  %1300 = vmatpush1.msra.mxu0 %v1276
  %1301 = vmatprep.subr.mxu0 0.0
  %1302 = vmatpush1.msra.mxu0 %v1277
  %1303 = vmatprep.subr.mxu0 0.0
  %1304 = vmatpush1.msra.mxu0 %v1278
  %1305 = vmatprep.subr.mxu0 0.0
  %1306 = vmatpush1.msra.mxu0 %v1279
  %1307 = vmatprep.subr.mxu0 0.0
  %1308 = vmatpush1.msra.mxu0 %v1280
  %1309 = vmatprep.subr.mxu0 0.0
  %1310 = vmatpush1.msra.mxu0 %v1281
  %1311 = vmatprep.subr.mxu0 0.0
  %1312 = vmatpush1.msra.mxu0 %v1282
  %1313 = vmatprep.subr.mxu0 0.0
  %1314 = vmatpush1.msra.mxu0 %v1283
  %1315 = vmatprep.subr.mxu0 0.0
  %1316 = vmatpush1.msra.mxu0 %v1284
  %1317 = vmatprep.subr.mxu0 0.0
  %1318 = vmatpush1.msra.mxu0 0.0
  %1319 = vmatprep.subr.mxu0 0.0
  %1320 = vmatpush1.msra.mxu0 0.0
  %1321 = vmatprep.subr.mxu0 0.0
  %1322 = vmatpush1.msra.mxu0 0.0
  %1323 = vmatprep.subr.mxu0 0.0
  %1324 = vmatpush1.msra.mxu0 0.0
  %1325 = vmatprep.subr.mxu0 0.0
  %1326 = vmatpush1.msra.mxu0 0.0
  %1327 = vmatprep.subr.mxu0 0.0
  %1328 = vmatpush1.msra.mxu0 0.0
  %1329 = vmatprep.subr.mxu0 0.0
  %1330 = vmatpush1.msra.mxu0 0.0
  %1331 = vmatprep.subr.mxu0 0.0
  %1332 = vmatpush1.msra.mxu0 0.0
  %1333 = vmatprep.subr.mxu0 0.0
  %1334 = vmatpush1.msra.mxu0 0.0
  %1335 = vmatprep.subr.mxu0 0.0
  %1336 = vmatpush1.msra.mxu0 0.0
  %1337 = vmatprep.subr.mxu0 0.0
  %1338 = vmatpush1.msra.mxu0 0.0
  %1339 = vmatprep.subr.mxu0 0.0
  %1340 = vmatpush1.msra.mxu0 0.0
  %1341 = vmatprep.subr.mxu0 0.0
  %1342 = vmatpush1.msra.mxu0 0.0
  %1343 = vmatprep.subr.mxu0 0.0
  %1344 = vmatpush1.msra.mxu0 0.0
  %1345 = vmatprep.subr.mxu0 0.0
  %1346 = vmatpush1.msra.mxu0 0.0
  %1347 = vmatprep.subr.mxu0 0.0
  %1348 = vmatpush1.msra.mxu0 0.0
  %1349 = vmatprep.mubr.f32.mxu0 0.0
  %1350 = vmatmul.mubr.f32.gmra.mrb[0].mxu0 %v137
  %v1351 = vpop.f32.mrb[0].mxu0
  %v1352 = vadd.f32 0.0, %v1351
  %v1353 = vpop.f32.mrb[0].mxu0
  %1354 = vdwg.mxu0
  %s1355 = scalar_lea.vmem %s3, 1792
  %v1356 = vld [vmem:[%s1355] sm:$0xff]
  %v1357 = vld [vmem:[%s1355 + $0x8] sm:$0xff]
  %v1358 = vld [vmem:[%s1355 + $0x10] sm:$0xff]
  %v1359 = vld [vmem:[%s1355 + $0x18] sm:$0xff]
  %v1360 = vld [vmem:[%s1355 + $0x20] sm:$0xff]
  %v1361 = vld [vmem:[%s1355 + $0x28] sm:$0xff]
  %v1362 = vld [vmem:[%s1355 + $0x30] sm:$0xff]
  %v1363 = vld [vmem:[%s1355 + $0x38] sm:$0xff]
  %v1364 = vld [vmem:[%s1355 + $0x40] sm:$0xff]
  %v1365 = vld [vmem:[%s1355 + $0x48] sm:$0xff]
  %v1366 = vld [vmem:[%s1355 + $0x50] sm:$0xff]
  %v1367 = vld [vmem:[%s1355 + $0x58] sm:$0xff]
  %v1368 = vld [vmem:[%s1355 + $0x60] sm:$0xff]
  %v1369 = vld [vmem:[%s1355 + $0x68] sm:$0xff]
  %v1370 = vld [vmem:[%s1355 + $0x70] sm:$0xff]
  %v1371 = vld [vmem:[%s1355 + $0x78] sm:$0xff]
  %1372 = vmatprep.subr.mxu0 0.0
  %1373 = vmatpush1.msra.mxu0 %v1356
  %1374 = vmatprep.subr.mxu0 0.0
  %1375 = vmatpush1.msra.mxu0 %v1357
  %1376 = vmatprep.subr.mxu0 0.0
  %1377 = vmatpush1.msra.mxu0 %v1358
  %1378 = vmatprep.subr.mxu0 0.0
  %1379 = vmatpush1.msra.mxu0 %v1359
  %1380 = vmatprep.subr.mxu0 0.0
  %1381 = vmatpush1.msra.mxu0 %v1360
  %1382 = vmatprep.subr.mxu0 0.0
  %1383 = vmatpush1.msra.mxu0 %v1361
  %1384 = vmatprep.subr.mxu0 0.0
  %1385 = vmatpush1.msra.mxu0 %v1362
  %1386 = vmatprep.subr.mxu0 0.0
  %1387 = vmatpush1.msra.mxu0 %v1363
  %1388 = vmatprep.subr.mxu0 0.0
  %1389 = vmatpush1.msra.mxu0 %v1364
  %1390 = vmatprep.subr.mxu0 0.0
  %1391 = vmatpush1.msra.mxu0 %v1365
  %1392 = vmatprep.subr.mxu0 0.0
  %1393 = vmatpush1.msra.mxu0 %v1366
  %1394 = vmatprep.subr.mxu0 0.0
  %1395 = vmatpush1.msra.mxu0 %v1367
  %1396 = vmatprep.subr.mxu0 0.0
  %1397 = vmatpush1.msra.mxu0 %v1368
  %1398 = vmatprep.subr.mxu0 0.0
  %1399 = vmatpush1.msra.mxu0 %v1369
  %1400 = vmatprep.subr.mxu0 0.0
  %1401 = vmatpush1.msra.mxu0 %v1370
  %1402 = vmatprep.subr.mxu0 0.0
  %1403 = vmatpush1.msra.mxu0 %v1371
  %1404 = vmatprep.subr.mxu0 0.0
  %1405 = vmatpush1.msra.mxu0 0.0
  %1406 = vmatprep.subr.mxu0 0.0
  %1407 = vmatpush1.msra.mxu0 0.0
  %1408 = vmatprep.subr.mxu0 0.0
  %1409 = vmatpush1.msra.mxu0 0.0
  %1410 = vmatprep.subr.mxu0 0.0
  %1411 = vmatpush1.msra.mxu0 0.0
  %1412 = vmatprep.subr.mxu0 0.0
  %1413 = vmatpush1.msra.mxu0 0.0
  %1414 = vmatprep.subr.mxu0 0.0
  %1415 = vmatpush1.msra.mxu0 0.0
  %1416 = vmatprep.subr.mxu0 0.0
  %1417 = vmatpush1.msra.mxu0 0.0
  %1418 = vmatprep.subr.mxu0 0.0
  %1419 = vmatpush1.msra.mxu0 0.0
  %1420 = vmatprep.subr.mxu0 0.0
  %1421 = vmatpush1.msra.mxu0 0.0
  %1422 = vmatprep.subr.mxu0 0.0
  %1423 = vmatpush1.msra.mxu0 0.0
  %1424 = vmatprep.subr.mxu0 0.0
  %1425 = vmatpush1.msra.mxu0 0.0
  %1426 = vmatprep.subr.mxu0 0.0
  %1427 = vmatpush1.msra.mxu0 0.0
  %1428 = vmatprep.subr.mxu0 0.0
  %1429 = vmatpush1.msra.mxu0 0.0
  %1430 = vmatprep.subr.mxu0 0.0
  %1431 = vmatpush1.msra.mxu0 0.0
  %1432 = vmatprep.subr.mxu0 0.0
  %1433 = vmatpush1.msra.mxu0 0.0
  %1434 = vmatprep.subr.mxu0 0.0
  %1435 = vmatpush1.msra.mxu0 0.0
  %1436 = vmatprep.mubr.f32.mxu0 0.0
  %1437 = vmatmul.mubr.f32.gmra.mrb[0].mxu0 %v137
  %v1438 = vpop.f32.mrb[0].mxu0
  %v1439 = vadd.f32 0.0, %v1438
  %v1440 = vpop.f32.mrb[0].mxu0
  %1441 = vdwg.mxu0
  %s1442 = scalar_lea.vmem %s3, 1920
  %v1443 = vld [vmem:[%s1442] sm:$0xff]
  %v1444 = vld [vmem:[%s1442 + $0x8] sm:$0xff]
  %v1445 = vld [vmem:[%s1442 + $0x10] sm:$0xff]
  %v1446 = vld [vmem:[%s1442 + $0x18] sm:$0xff]
  %v1447 = vld [vmem:[%s1442 + $0x20] sm:$0xff]
  %v1448 = vld [vmem:[%s1442 + $0x28] sm:$0xff]
  %v1449 = vld [vmem:[%s1442 + $0x30] sm:$0xff]
  %v1450 = vld [vmem:[%s1442 + $0x38] sm:$0xff]
  %v1451 = vld [vmem:[%s1442 + $0x40] sm:$0xff]
  %v1452 = vld [vmem:[%s1442 + $0x48] sm:$0xff]
  %v1453 = vld [vmem:[%s1442 + $0x50] sm:$0xff]
  %v1454 = vld [vmem:[%s1442 + $0x58] sm:$0xff]
  %v1455 = vld [vmem:[%s1442 + $0x60] sm:$0xff]
  %v1456 = vld [vmem:[%s1442 + $0x68] sm:$0xff]
  %v1457 = vld [vmem:[%s1442 + $0x70] sm:$0xff]
  %v1458 = vld [vmem:[%s1442 + $0x78] sm:$0xff]
  %1459 = vmatprep.subr.mxu0 0.0
  %1460 = vmatpush1.msra.mxu0 %v1443
  %1461 = vmatprep.subr.mxu0 0.0
  %1462 = vmatpush1.msra.mxu0 %v1444
  %1463 = vmatprep.subr.mxu0 0.0
  %1464 = vmatpush1.msra.mxu0 %v1445
  %1465 = vmatprep.subr.mxu0 0.0
  %1466 = vmatpush1.msra.mxu0 %v1446
  %1467 = vmatprep.subr.mxu0 0.0
  %1468 = vmatpush1.msra.mxu0 %v1447
  %1469 = vmatprep.subr.mxu0 0.0
  %1470 = vmatpush1.msra.mxu0 %v1448
  %1471 = vmatprep.subr.mxu0 0.0
  %1472 = vmatpush1.msra.mxu0 %v1449
  %1473 = vmatprep.subr.mxu0 0.0
  %1474 = vmatpush1.msra.mxu0 %v1450
  %1475 = vmatprep.subr.mxu0 0.0
  %1476 = vmatpush1.msra.mxu0 %v1451
  %1477 = vmatprep.subr.mxu0 0.0
  %1478 = vmatpush1.msra.mxu0 %v1452
  %1479 = vmatprep.subr.mxu0 0.0
  %1480 = vmatpush1.msra.mxu0 %v1453
  %1481 = vmatprep.subr.mxu0 0.0
  %1482 = vmatpush1.msra.mxu0 %v1454
  %1483 = vmatprep.subr.mxu0 0.0
  %1484 = vmatpush1.msra.mxu0 %v1455
  %1485 = vmatprep.subr.mxu0 0.0
  %1486 = vmatpush1.msra.mxu0 %v1456
  %1487 = vmatprep.subr.mxu0 0.0
  %1488 = vmatpush1.msra.mxu0 %v1457
  %1489 = vmatprep.subr.mxu0 0.0
  %1490 = vmatpush1.msra.mxu0 %v1458
  %1491 = vmatprep.subr.mxu0 0.0
  %1492 = vmatpush1.msra.mxu0 0.0
  %1493 = vmatprep.subr.mxu0 0.0
  %1494 = vmatpush1.msra.mxu0 0.0
  %1495 = vmatprep.subr.mxu0 0.0
  %1496 = vmatpush1.msra.mxu0 0.0
  %1497 = vmatprep.subr.mxu0 0.0
  %1498 = vmatpush1.msra.mxu0 0.0
  %1499 = vmatprep.subr.mxu0 0.0
  %1500 = vmatpush1.msra.mxu0 0.0
  %1501 = vmatprep.subr.mxu0 0.0
  %1502 = vmatpush1.msra.mxu0 0.0
  %1503 = vmatprep.subr.mxu0 0.0
  %1504 = vmatpush1.msra.mxu0 0.0
  %1505 = vmatprep.subr.mxu0 0.0
  %1506 = vmatpush1.msra.mxu0 0.0
  %1507 = vmatprep.subr.mxu0 0.0
  %1508 = vmatpush1.msra.mxu0 0.0
  %1509 = vmatprep.subr.mxu0 0.0
  %1510 = vmatpush1.msra.mxu0 0.0
  %1511 = vmatprep.subr.mxu0 0.0
  %1512 = vmatpush1.msra.mxu0 0.0
  %1513 = vmatprep.subr.mxu0 0.0
  %1514 = vmatpush1.msra.mxu0 0.0
  %1515 = vmatprep.subr.mxu0 0.0
  %1516 = vmatpush1.msra.mxu0 0.0
  %1517 = vmatprep.subr.mxu0 0.0
  %1518 = vmatpush1.msra.mxu0 0.0
  %1519 = vmatprep.subr.mxu0 0.0
  %1520 = vmatpush1.msra.mxu0 0.0
  %1521 = vmatprep.subr.mxu0 0.0
  %1522 = vmatpush1.msra.mxu0 0.0
  %1523 = vmatprep.mubr.f32.mxu0 0.0
  %1524 = vmatmul.mubr.f32.gmra.mrb[0].mxu0 %v137
  %v1525 = vpop.f32.mrb[0].mxu0
  %v1526 = vadd.f32 0.0, %v1525
  %v1527 = vpop.f32.mrb[0].mxu0
  %1528 = vdwg.mxu0
  %v1529 = vld [vmem:[%s2] sm:$0xff]
  %v1530 = vld [vmem:[%s2 + $0x8] sm:$0xff]
  %1531 = vmatprep.subr.mxu0 0.0
  %1532 = vmatpush1.msra.mxu0 %v221
  %1533 = vmatprep.subr.mxu0 0.0
  %1534 = vmatpush1.msra.mxu0 %v308
  %1535 = vmatprep.subr.mxu0 0.0
  %1536 = vmatpush1.msra.mxu0 %v395
  %1537 = vmatprep.subr.mxu0 0.0
  %1538 = vmatpush1.msra.mxu0 %v482
  %1539 = vmatprep.subr.mxu0 0.0
  %1540 = vmatpush1.msra.mxu0 %v569
  %1541 = vmatprep.subr.mxu0 0.0
  %1542 = vmatpush1.msra.mxu0 %v656
  %1543 = vmatprep.subr.mxu0 0.0
  %1544 = vmatpush1.msra.mxu0 %v743
  %1545 = vmatprep.subr.mxu0 0.0
  %1546 = vmatpush1.msra.mxu0 %v830
  %1547 = vmatprep.subr.mxu0 0.0
  %1548 = vmatpush1.msra.mxu0 %v917
  %1549 = vmatprep.subr.mxu0 0.0
  %1550 = vmatpush1.msra.mxu0 %v1004
  %1551 = vmatprep.subr.mxu0 0.0
  %1552 = vmatpush1.msra.mxu0 %v1091
  %1553 = vmatprep.subr.mxu0 0.0
  %1554 = vmatpush1.msra.mxu0 %v1178
  %1555 = vmatprep.subr.mxu0 0.0
  %1556 = vmatpush1.msra.mxu0 %v1265
  %1557 = vmatprep.subr.mxu0 0.0
  %1558 = vmatpush1.msra.mxu0 %v1352
  %1559 = vmatprep.subr.mxu0 0.0
  %1560 = vmatpush1.msra.mxu0 %v1439
  %1561 = vmatprep.subr.mxu0 0.0
  %1562 = vmatpush1.msra.mxu0 %v1526
  %1563 = vmatprep.subr.mxu0 0.0
  %1564 = vmatpush1.msra.mxu0 0.0
  %1565 = vmatprep.subr.mxu0 0.0
  %1566 = vmatpush1.msra.mxu0 0.0
  %1567 = vmatprep.subr.mxu0 0.0
  %1568 = vmatpush1.msra.mxu0 0.0
  %1569 = vmatprep.subr.mxu0 0.0
  %1570 = vmatpush1.msra.mxu0 0.0
  %1571 = vmatprep.subr.mxu0 0.0
  %1572 = vmatpush1.msra.mxu0 0.0
  %1573 = vmatprep.subr.mxu0 0.0
  %1574 = vmatpush1.msra.mxu0 0.0
  %1575 = vmatprep.subr.mxu0 0.0
  %1576 = vmatpush1.msra.mxu0 0.0
  %1577 = vmatprep.subr.mxu0 0.0
  %1578 = vmatpush1.msra.mxu0 0.0
  %1579 = vmatprep.subr.mxu0 0.0
  %1580 = vmatpush1.msra.mxu0 0.0
  %1581 = vmatprep.subr.mxu0 0.0
  %1582 = vmatpush1.msra.mxu0 0.0
  %1583 = vmatprep.subr.mxu0 0.0
  %1584 = vmatpush1.msra.mxu0 0.0
  %1585 = vmatprep.subr.mxu0 0.0
  %1586 = vmatpush1.msra.mxu0 0.0
  %1587 = vmatprep.subr.mxu0 0.0
  %1588 = vmatpush1.msra.mxu0 0.0
  %1589 = vmatprep.subr.mxu0 0.0
  %1590 = vmatpush1.msra.mxu0 0.0
  %1591 = vmatprep.subr.mxu0 0.0
  %1592 = vmatpush1.msra.mxu0 0.0
  %1593 = vmatprep.subr.mxu0 0.0
  %1594 = vmatpush1.msra.mxu0 0.0
  %1595 = vmatprep.mubr.f32.mxu0 0.0
  %1596 = vmatmul.mubr.f32.gmra.mrb[0].mxu0 %v1529
  %v1597 = vpop.f32.mrb[0].mxu0
  %v1598 = vadd.f32 0.0, %v1597
  %v1599 = vpop.f32.mrb[0].mxu0
  %1600 = vmatprep.mubr.f32.mxu0 0.0
  %1601 = vmatmul.mubr.f32.gmra.mrb[0].mxu0 %v1530
  %v1602 = vpop.f32.mrb[0].mxu0
  %v1603 = vadd.f32 0.0, %v1602
  %v1604 = vpop.f32.mrb[0].mxu0
  %1605 = vdwg.mxu0
  %v1606 = vld [vmem:[%s4 + $0x8] sm:$0xff]
  %v1607 = vld [vmem:[%s4 + $0x10] sm:$0xff]
  %vm1608 = vcmask 261120
  %v1609 = vsel %vm1608, %v1598, 0.0
  %1610 = vadd.xlane.f32.xlu0 %v1609
  %v1611 = vpop.xlane.xlu0 %1610
  %v1612 = vsel %vm1608, %v1603, 0.0
  %1613 = vadd.xlane.f32.xlu0 %v1612
  %v1614 = vpop.xlane.xlu0 %1613
  %v1615 = vrcp.pop 32.0
  %v1616 = vmul.f32 %v1611, %v1615
  %v1617 = vmul.f32 %v1614, %v1615
  %v1618 = vmul.f32 %v1598, %v1598
  %v1619 = vmul.f32 %v1603, %v1603
  %v1620 = vsel %vm1608, %v1618, 0.0
  %1621 = vadd.xlane.f32.xlu0 %v1620
  %v1622 = vpop.xlane.xlu0 %1621
  %v1623 = vsel %vm1608, %v1619, 0.0
  %1624 = vadd.xlane.f32.xlu0 %v1623
  %v1625 = vpop.xlane.xlu0 %1624
  %v1626 = vmul.f32 %v1622, %v1615
  %v1627 = vmul.f32 %v1625, %v1615
  %v1628 = vmul.f32 %v1616, %v1616
  %v1629 = vmul.f32 %v1617, %v1617
  %v1630 = vsub.f32 %v1626, %v1628
  %v1631 = vsub.f32 %v1627, %v1629
  %v1632 = vadd.f32 %v1630, 1e-05
  %v1633 = vadd.f32 %v1631, 1e-05
  %v1634 = vrsqrt.pop %v1632
  %v1635 = vrsqrt.pop %v1633
  %v1636 = vmul.f32 %v1606, %v1634
  %v1637 = vmul.f32 %v1607, %v1635
  %v1638 = vmul.f32 %v1616, %v1636
  %v1639 = vmul.f32 %v1617, %v1637
  %1642 = vrot.lane.b32.xlu0 %v1638, 1
  %v1643 = vpop.permute.xlu0 %1642
  %1644 = vrot.lane.b32.xlu0 %v1639, 1
  %v1645 = vpop.permute.xlu0 %1644
  %v1648 = vsub.f32 %v1606, %v1643
  %v1649 = vsub.f32 %v1607, %v1645
  %1651 = vset.pattern.permute.xlu0 0
  %1652 = vperm.xlu0 %1651, %v1636
  %v1653 = vpop.permute.xlu0 %1652
  %1656 = vset.pattern.permute.xlu0 0
  %1657 = vperm.xlu0 %1656, %v1637
  %v1658 = vpop.permute.xlu0 %1657
  %v1660 = vmul.f32 %v1598, %v1653
  %v1661 = vmul.f32 %v1603, %v1658
  %1663 = vset.pattern.permute.xlu0 1
  %1664 = vperm.xlu0 %1663, %v1648
  %v1665 = vpop.permute.xlu0 %1664
  %1668 = vset.pattern.permute.xlu0 1
  %1669 = vperm.xlu0 %1668, %v1649
  %v1670 = vpop.permute.xlu0 %1669
  %v1672 = vadd.f32 %v1660, %v1665
  %v1673 = vadd.f32 %v1661, %v1670
  %vm1674 = vcmp.ge.f32.partialorder %v1672, 0.0
  %vm1675 = vcmp.ge.f32.partialorder %v1673, 0.0
  %v1676 = vmul.f32 %v1672, 0.2
  %v1677 = vmul.f32 %v1673, 0.2
  %v1678 = vsel %vm1674, %v1672, %v1676
  %v1679 = vsel %vm1675, %v1673, %v1677
  %vm1680 = vcmask 130048
  %1681 = vst.msk [vmem:[%s5] sm:$0xff] %vm1680, %v1678
  %1682 = vst.msk [vmem:[%s5 + $0x8] sm:$0xff] %vm1680, %v1679
  %1685 = vrot.lane.b32.xlu0 %v1678, 112
  %v1686 = vpop.permute.xlu0 %1685
  %1687 = vrot.lane.b32.xlu0 %v1679, 112
  %v1688 = vpop.permute.xlu0 %1687
  %s1691 = scalar_lea.vmem %s5, 16
  %1692 = vst.msk [vmem:[%s1691] sm:$0xff] %vm1680, %v1686
  %1693 = vst.msk [vmem:[%s1691 + $0x8] sm:$0xff] %vm1680, %v1688
  // Predicated region
  $region22: #{denoiser_special2_forward.1} parent=0 // pred_check
    _
  $region23: #{denoiser_special2_forward.1} parent=0 // pred_check_branch
    %1695 = sbr.rel (0) target = $region25
  $region24: #{denoiser_special2_forward.1} parent=0 // pred_region
    _
  $region25: #{denoiser_special2_forward.1} parent=0 // pred_fallthru
    _
  // Predicated region
  $region26: #{denoiser_special2_forward.1} parent=0 // pred_check
    _
  $region27: #{denoiser_special2_forward.1} parent=0 // pred_check_branch
    %1697 = sbr.rel (0) target = $region29
  $region28: #{denoiser_special2_forward.1} parent=0 // pred_region
    _
  $region29: #{denoiser_special2_forward.1} parent=0 // pred_fallthru
    _

</llo_original>
